<compile_context>
chip_gen: v5e
topology: v5e:2x2
jax: 0.10.0
libtpu: 0.0.40
codegen_flags: <defaults>
</compile_context>

<pallas_src>
import jax
import jax.numpy as jnp
from jax.experimental import pallas as pl
from jax.experimental.pallas import tpu as pltpu

Z_DIM = 64
HIDDEN = 256
IMG_DIM = 784              # 28*28 MNIST generator output
DEFAULT_TILE_B = 512       # batch rows per grid step (amortizes step overhead)


def generator_kernel(x_ref, w1_ref, b1_ref, w2_ref, b2_ref, o_ref):
    # Linear(z_dim, 256): bf16 x bf16 -> f32 accumulate on the MXU.
    x = x_ref[...].astype(jnp.bfloat16)
    h = jnp.dot(x, w1_ref[...], preferred_element_type=jnp.float32)
    h = h + b1_ref[...]
    # LeakyReLU(0.1)
    h = jnp.where(h > 0, h, 0.1 * h)
    # Linear(256, img_dim): bf16 x bf16 -> f32 accumulate.
    h = h.astype(jnp.bfloat16)
    y = jnp.dot(h, w2_ref[...], preferred_element_type=jnp.float32)
    y = y + b2_ref[...]
    # Tanh (EUP); store directly at the natural 784-lane width.
    o_ref[...] = jnp.tanh(y).astype(o_ref.dtype)


def _pick_tile_b(batch, desired=DEFAULT_TILE_B):
    """Large tiles to amortize per-step overhead, but keep >=2 grid steps for
    small batches so both v7x TensorCores get work. Tile must be a multiple
    of 8 (sublane granularity)."""
    if batch > desired:
        return desired
    half = pl.cdiv(batch, 2)
    return max(8, ((half + 7) // 8) * 8)


def generator_forward(x, w1, b1, w2, b2, *, tile_b=None):
    """x: (B, Z_DIM) f32; w1: (Z_DIM, HIDDEN); b1: (HIDDEN,);
    w2: (HIDDEN, IMG_DIM); b2: (IMG_DIM,). Returns (B, IMG_DIM) f32."""
    B = x.shape[0]
    if tile_b is None:
        tile_b = _pick_tile_b(B)
    n_tiles = pl.cdiv(B, tile_b)

    w1_bf = w1.astype(jnp.bfloat16)
    b1_2d = b1.reshape(1, HIDDEN).astype(jnp.float32)
    w2_bf = w2.astype(jnp.bfloat16)
    b2_2d = b2.reshape(1, IMG_DIM).astype(jnp.float32)

    out = pl.pallas_call(
        generator_kernel,
        out_shape=jax.ShapeDtypeStruct((B, IMG_DIM), jnp.float32),
        grid_spec=pltpu.PrefetchScalarGridSpec(
            num_scalar_prefetch=0,
            grid=(n_tiles,),
            in_specs=[
                # x: one batch tile per grid step (double-buffered by Pallas);
                # ragged last block handled automatically, OOB rows discarded.
                pl.BlockSpec((tile_b, Z_DIM), lambda i: (i, 0)),
                # Weights/biases: constant block index -> fetched once, stay
                # resident in VMEM across all grid steps.
                pl.BlockSpec((Z_DIM, HIDDEN), lambda i: (0, 0)),
                pl.BlockSpec((1, HIDDEN), lambda i: (0, 0)),
                pl.BlockSpec((HIDDEN, IMG_DIM), lambda i: (0, 0)),
                pl.BlockSpec((1, IMG_DIM), lambda i: (0, 0)),
            ],
            out_specs=pl.BlockSpec((tile_b, IMG_DIM), lambda i: (i, 0)),
        ),
        compiler_params=pltpu.CompilerParams(
            dimension_semantics=("parallel",),   # shard batch tiles across TCs (v7x)
            vmem_limit_bytes=32 * 1024 * 1024,   # headroom vs v5e's 16 MiB default
        ),
    )(x, w1_bf, b1_2d, w2_bf, b2_2d)

    return out


def reference_forward(x, w1, b1, w2, b2):
    """Pure f32 reference matching the PyTorch module."""
    h = x @ w1 + b1
    h = jnp.where(h > 0, h, 0.1 * h)
    return jnp.tanh(h @ w2 + b2)


def reference_forward_bf16(x, w1, b1, w2, b2):
    """Reference with the same bf16 weight/activation quantization as the kernel."""
    h = jnp.dot(x.astype(jnp.bfloat16), w1.astype(jnp.bfloat16),
                preferred_element_type=jnp.float32) + b1
    h = jnp.where(h > 0, h, 0.1 * h)
    y = jnp.dot(h.astype(jnp.bfloat16), w2.astype(jnp.bfloat16),
                preferred_element_type=jnp.float32) + b2
    return jnp.tanh(y)


if __name__ == "__main__":
    key = jax.random.PRNGKey(0)
    k_x, k_w1, k_b1, k_w2, k_b2 = jax.random.split(key, 5)

    # B not a multiple of the chosen tile -> exercises ragged last block and
    # the >=2-grid-step path (tile_b becomes 104 -> 2 tiles).
    B = 200
    x = jax.random.normal(k_x, (B, Z_DIM), dtype=jnp.float32)

    # Kaiming-uniform-ish init like nn.Linear defaults.
    lim1 = 1.0 / (Z_DIM ** 0.5)
    lim2 = 1.0 / (HIDDEN ** 0.5)
    w1 = jax.random.uniform(k_w1, (Z_DIM, HIDDEN), jnp.float32, -lim1, lim1)
    b1 = jax.random.uniform(k_b1, (HIDDEN,), jnp.float32, -lim1, lim1)
    w2 = jax.random.uniform(k_w2, (HIDDEN, IMG_DIM), jnp.float32, -lim2, lim2)
    b2 = jax.random.uniform(k_b2, (IMG_DIM,), jnp.float32, -lim2, lim2)

    out = generator_forward(x, w1, b1, w2, b2)
    out = jax.block_until_ready(out)
    assert out.shape == (B, IMG_DIM)

    # Tight check vs bf16-quantized reference (same numerics as the kernel).
    ref_q = reference_forward_bf16(x, w1, b1, w2, b2)
    assert jnp.allclose(out, ref_q, atol=2e-3, rtol=0), "mismatch vs bf16 reference"

    # Loose check vs the true f32 PyTorch-equivalent reference (bf16 weight
    # quantization error only; f32 accumulation keeps it small).
    ref = reference_forward(x, w1, b1, w2, b2)
    assert jnp.allclose(out, ref, atol=2e-2, rtol=0), "mismatch vs f32 reference"

    print("KERNEL_OK")
</pallas_src>

<mosaic_0001>
module attributes {stable_mosaic.version = 11 : i64} {
  func.func @generator_kernel(%arg0: i32, %arg1: memref<104x64xf32, #tpu.memory_space<vmem>>, %arg2: memref<64x256xbf16, #tpu.memory_space<vmem>>, %arg3: memref<1x256xf32, #tpu.memory_space<vmem>>, %arg4: memref<256x784xbf16, #tpu.memory_space<vmem>>, %arg5: memref<1x784xf32, #tpu.memory_space<vmem>>, %arg6: memref<104x784xf32, #tpu.memory_space<vmem>>) attributes {dimension_semantics = [#tpu.dimension_semantics<parallel>], iteration_bounds = array<i64: 2>, scalar_prefetch = 0 : i64, scratch_operands = 0 : i64, tpu.core_type = #tpu.core_type<tc>, window_params = [{transform_indices = @transform_0, window_bounds = array<i64: 104, 64>}, {pipeline_mode = #tpu.pipeline_mode<synchronous>, transform_indices = @transform_1, window_bounds = array<i64: 64, 256>}, {pipeline_mode = #tpu.pipeline_mode<synchronous>, transform_indices = @transform_2, window_bounds = array<i64: 1, 256>}, {pipeline_mode = #tpu.pipeline_mode<synchronous>, transform_indices = @transform_3, window_bounds = array<i64: 256, 784>}, {pipeline_mode = #tpu.pipeline_mode<synchronous>, transform_indices = @transform_4, window_bounds = array<i64: 1, 784>}, {transform_indices = @transform_5, window_bounds = array<i64: 104, 784>}]} {
    %c0 = arith.constant 0 : index
    %c0_0 = arith.constant 0 : index
    %0 = vector.load %arg1[%c0, %c0_0] : memref<104x64xf32, #tpu.memory_space<vmem>>, vector<104x64xf32>
    %1 = arith.truncf %0 : vector<104x64xf32> to vector<104x64xbf16>
    %c0_1 = arith.constant 0 : index
    %c0_2 = arith.constant 0 : index
    %2 = vector.load %arg2[%c0_1, %c0_2] : memref<64x256xbf16, #tpu.memory_space<vmem>>, vector<64x256xbf16>
    %cst = arith.constant dense<0.000000e+00> : vector<104x256xf32>
    %3 = tpu.matmul %1, %2, %cst {dimension_numbers = #tpu.dot_dimension_numbers<[1], [0], [0], [1], [0, 0, 1, 1], [], []>} : vector<104x64xbf16>, vector<64x256xbf16>, vector<104x256xf32> -> vector<104x256xf32>
    %c0_3 = arith.constant 0 : index
    %c0_4 = arith.constant 0 : index
    %4 = vector.load %arg3[%c0_3, %c0_4] : memref<1x256xf32, #tpu.memory_space<vmem>>, vector<1x256xf32>
    %5 = vector.broadcast %4 : vector<1x256xf32> to vector<104x256xf32>
    %6 = arith.addf %3, %5 : vector<104x256xf32>
    %cst_5 = arith.constant 0.000000e+00 : f32
    %7 = vector.broadcast %cst_5 : f32 to vector<104x256xf32>
    %8 = arith.cmpf ogt, %6, %7 : vector<104x256xf32>
    %cst_6 = arith.constant 1.000000e-01 : f32
    %9 = vector.broadcast %cst_6 : f32 to vector<104x256xf32>
    %10 = arith.mulf %9, %6 : vector<104x256xf32>
    %11 = arith.select %8, %6, %10 : vector<104x256xi1>, vector<104x256xf32>
    %12 = arith.truncf %11 : vector<104x256xf32> to vector<104x256xbf16>
    %c0_7 = arith.constant 0 : index
    %c0_8 = arith.constant 0 : index
    %13 = vector.load %arg4[%c0_7, %c0_8] : memref<256x784xbf16, #tpu.memory_space<vmem>>, vector<256x784xbf16>
    %cst_9 = arith.constant dense<0.000000e+00> : vector<104x784xf32>
    %14 = tpu.matmul %12, %13, %cst_9 {dimension_numbers = #tpu.dot_dimension_numbers<[1], [0], [0], [1], [0, 0, 1, 1], [], []>} : vector<104x256xbf16>, vector<256x784xbf16>, vector<104x784xf32> -> vector<104x784xf32>
    %c0_10 = arith.constant 0 : index
    %c0_11 = arith.constant 0 : index
    %15 = vector.load %arg5[%c0_10, %c0_11] : memref<1x784xf32, #tpu.memory_space<vmem>>, vector<1x784xf32>
    %16 = vector.broadcast %15 : vector<1x784xf32> to vector<104x784xf32>
    %17 = arith.addf %14, %16 : vector<104x784xf32>
    %18 = math.tanh %17 : vector<104x784xf32>
    %c0_12 = arith.constant 0 : index
    %c0_13 = arith.constant 0 : index
    %19 = vector.load %arg6[%c0_12, %c0_13] : memref<104x784xf32, #tpu.memory_space<vmem>>, vector<104x784xf32>
    tpu.vector_store %arg6[%c0_12, %c0_13], %18 {strides = array<i32>} : memref<104x784xf32, #tpu.memory_space<vmem>>, vector<104x784xf32>,
    return
  }
  func.func @transform_0(%arg0: i32) -> (i32, i32) {
    %c0_i32 = arith.constant 0 : i32
    %c0_i32_0 = arith.constant 0 : i32
    return %arg0, %c0_i32 : i32, i32
  }
  func.func @transform_1(%arg0: i32) -> (i32, i32) {
    %c0_i32 = arith.constant 0 : i32
    %c0_i32_0 = arith.constant 0 : i32
    %c0_i32_1 = arith.constant 0 : i32
    return %c0_i32, %c0_i32_0 : i32, i32
  }
  func.func @transform_2(%arg0: i32) -> (i32, i32) {
    %c0_i32 = arith.constant 0 : i32
    %c0_i32_0 = arith.constant 0 : i32
    %c0_i32_1 = arith.constant 0 : i32
    return %c0_i32, %c0_i32_0 : i32, i32
  }
  func.func @transform_3(%arg0: i32) -> (i32, i32) {
    %c0_i32 = arith.constant 0 : i32
    %c0_i32_0 = arith.constant 0 : i32
    %c0_i32_1 = arith.constant 0 : i32
    return %c0_i32, %c0_i32_0 : i32, i32
  }
  func.func @transform_4(%arg0: i32) -> (i32, i32) {
    %c0_i32 = arith.constant 0 : i32
    %c0_i32_0 = arith.constant 0 : i32
    %c0_i32_1 = arith.constant 0 : i32
    return %c0_i32, %c0_i32_0 : i32, i32
  }
  func.func @transform_5(%arg0: i32) -> (i32, i32) {
    %c0_i32 = arith.constant 0 : i32
    %c0_i32_0 = arith.constant 0 : i32
    return %arg0, %c0_i32 : i32, i32
  }
}

</mosaic_0001>

<llo_original>
// kernel: tpu_custom_call.1
$region0: #{tpu_custom_call.1}
  #allocation0 [shape = 'u32[]', space=smem, size = 0x4, offset = 0x4, fixed_abs, tag = 'smem constant byte address 0x4 - core index']
  #allocation1 [shape = 'u32[72,128]{1,0:T(1,128)}', space=vmem, size = 0x9000, scoped, tag = 'internal scratch']
  %s0 = inlined_call_operand.vmem [shape: f32[200,64], index: 0, kind: input, shape index: {}]
  %s1 = inlined_call_operand.vmem [shape: bf16[64,256], index: 1, kind: input, shape index: {}]
  %s2 = inlined_call_operand.vmem [shape: f32[1,256], index: 2, kind: input, shape index: {}]
  %s3 = inlined_call_operand.vmem [shape: bf16[256,784], index: 3, kind: input, shape index: {}]
  %s4 = inlined_call_operand.vmem [shape: f32[1,784], index: 4, kind: input, shape index: {}]
  %s5 = inlined_call_operand.hbm [shape: f32[200,784], index: 5, kind: output, shape index: {}]
  %s6 = sld [smem:[#allocation0]]
  $region53: #{tpu_custom_call.1} parent=0
    _
  %s8 = ssub.s32 1, %s6
  %s9 = scalar_select 0, %s8, %s6
  $region1: #{tpu_custom_call.1} parent=0
    #allocation2 [shape = 'u8[745472]{0}', space=vmem, size = 0xb6000, scoped, tag = 'output window, operand 0']
    #allocation3 [shape = 's32[2]{0}', space=sflag, size = 0x8, scoped, tag = 'scoped memory for tpu_custom_call.1']
    %10 = vsyncpa [#allocation3], 0
    %s11 = scalar_lea.sflag [#allocation3], 1
    %12 = vsyncpa %s11, 0
    loop: start=0, step=1, limit=4
    $region2: #{tpu_custom_call.1} parent=1 // loop_pre_header
      _
    $region3: #{tpu_custom_call.1} parent=1 // loop_header
      %s14 = sphi 0, %s18
      %p15 = scmp.ge.s32.totalorder %s14, 4
      %s24 = sphi 0, %s26
      %s27 = sphi 0, %s24
      %s28 = sphi 0, %s27
      %s44 = sphi 0, %s28
      %s48 = sphi 0, %s48
      %s50 = sphi 0, %s48
      %s51 = sphi 0, %s50
      %s65 = sphi 0, %s51
      %s69 = sphi 0, %s69
      %s71 = sphi 0, %s69
      %s72 = sphi 0, %s71
      %s86 = sphi 0, %s72
      %s90 = sphi 0, %s90
      %s92 = sphi 0, %s90
      %s93 = sphi 0, %s92
      %s107 = sphi 0, %s93
      %s111 = sphi 0, %s111
      %s113 = sphi 0, %s111
      %s114 = sphi 0, %s113
      %s128 = sphi 0, %s114
      %s134 = sphi 0, %s136
      %s137 = sphi 0, %s134
      %s138 = sphi 0, %s137
      %s154 = sphi 0, %s138
    $region4: #{tpu_custom_call.1} parent=1 // loop_header_branch
      %17 = sbr.rel (%p15) target = $region8
    $region5: #{tpu_custom_call.1} parent=1 // loop_body
      %s19 = ssub.s32 %s14, 1
      %s20 = ssub.s32 %s14, 2
      %s21 = sadd.s32 %s14, 1
      %s22 = ssub.s32 %s14, %s21
      %p23 = scmp.eq.s32.totalorder %s22, 0
      %s25 = sadd.s32 %s24, 1
      %s26 = scalar_select %p23, %s24, %s25
      %p29 = pneg %p23
      %p30 = scmp.eq.s32.totalorder %s14, 1
      %p31 = por %p29, %p30
      %p32 = scmp.ne.s32.totalorder %s24, %s27
      %p33 = scmp.eq.s32.totalorder %s14, 0
      %p34 = por %p32, %p33
      %p35 = scmp.ne.s32.totalorder %s24, %s27
      %p36 = scmp.eq.s32.totalorder %s19, 1
      %p37 = por %p35, %p36
      %p38 = scmp.ne.s32.totalorder %s27, %s28
      %p39 = scmp.eq.s32.totalorder %s19, 0
      %p40 = por %p38, %p39
      %p41 = scmp.ne.s32.totalorder %s27, %s28
      %p42 = scmp.eq.s32.totalorder %s20, 1
      %p43 = por %p41, %p42
      %p45 = scmp.ne.s32.totalorder %s28, %s44
      %p46 = scmp.eq.s32.totalorder %s20, 0
      %p47 = por %p45, %p46
      %s49 = sadd.s32 %s48, 1
      %p52 = scmp.eq.s32.totalorder %s14, 1
      %p53 = scmp.ne.s32.totalorder %s48, %s50
      %p54 = scmp.eq.s32.totalorder %s14, 0
      %p55 = por %p53, %p54
      %p56 = scmp.ne.s32.totalorder %s48, %s50
      %p57 = scmp.eq.s32.totalorder %s19, 1
      %p58 = por %p56, %p57
      %p59 = scmp.ne.s32.totalorder %s50, %s51
      %p60 = scmp.eq.s32.totalorder %s19, 0
      %p61 = por %p59, %p60
      %p62 = scmp.ne.s32.totalorder %s50, %s51
      %p63 = scmp.eq.s32.totalorder %s20, 1
      %p64 = por %p62, %p63
      %p66 = scmp.ne.s32.totalorder %s51, %s65
      %p67 = scmp.eq.s32.totalorder %s20, 0
      %p68 = por %p66, %p67
      %s70 = sadd.s32 %s69, 1
      %p73 = scmp.eq.s32.totalorder %s14, 1
      %p74 = scmp.ne.s32.totalorder %s69, %s71
      %p75 = scmp.eq.s32.totalorder %s14, 0
      %p76 = por %p74, %p75
      %p77 = scmp.ne.s32.totalorder %s69, %s71
      %p78 = scmp.eq.s32.totalorder %s19, 1
      %p79 = por %p77, %p78
      %p80 = scmp.ne.s32.totalorder %s71, %s72
      %p81 = scmp.eq.s32.totalorder %s19, 0
      %p82 = por %p80, %p81
      %p83 = scmp.ne.s32.totalorder %s71, %s72
      %p84 = scmp.eq.s32.totalorder %s20, 1
      %p85 = por %p83, %p84
      %p87 = scmp.ne.s32.totalorder %s72, %s86
      %p88 = scmp.eq.s32.totalorder %s20, 0
      %p89 = por %p87, %p88
      %s91 = sadd.s32 %s90, 1
      %p94 = scmp.eq.s32.totalorder %s14, 1
      %p95 = scmp.ne.s32.totalorder %s90, %s92
      %p96 = scmp.eq.s32.totalorder %s14, 0
      %p97 = por %p95, %p96
      %p98 = scmp.ne.s32.totalorder %s90, %s92
      %p99 = scmp.eq.s32.totalorder %s19, 1
      %p100 = por %p98, %p99
      %p101 = scmp.ne.s32.totalorder %s92, %s93
      %p102 = scmp.eq.s32.totalorder %s19, 0
      %p103 = por %p101, %p102
      %p104 = scmp.ne.s32.totalorder %s92, %s93
      %p105 = scmp.eq.s32.totalorder %s20, 1
      %p106 = por %p104, %p105
      %p108 = scmp.ne.s32.totalorder %s93, %s107
      %p109 = scmp.eq.s32.totalorder %s20, 0
      %p110 = por %p108, %p109
      %s112 = sadd.s32 %s111, 1
      %p115 = scmp.eq.s32.totalorder %s14, 1
      %p116 = scmp.ne.s32.totalorder %s111, %s113
      %p117 = scmp.eq.s32.totalorder %s14, 0
      %p118 = por %p116, %p117
      %p119 = scmp.ne.s32.totalorder %s111, %s113
      %p120 = scmp.eq.s32.totalorder %s19, 1
      %p121 = por %p119, %p120
      %p122 = scmp.ne.s32.totalorder %s113, %s114
      %p123 = scmp.eq.s32.totalorder %s19, 0
      %p124 = por %p122, %p123
      %p125 = scmp.ne.s32.totalorder %s113, %s114
      %p126 = scmp.eq.s32.totalorder %s20, 1
      %p127 = por %p125, %p126
      %p129 = scmp.ne.s32.totalorder %s114, %s128
      %p130 = scmp.eq.s32.totalorder %s20, 0
      %p131 = por %p129, %p130
      %s132 = ssub.s32 %s14, %s21
      %p133 = scmp.eq.s32.totalorder %s132, 0
      %s135 = sadd.s32 %s134, 1
      %s136 = scalar_select %p133, %s134, %s135
      %p139 = pneg %p133
      %p140 = scmp.eq.s32.totalorder %s14, 1
      %p141 = por %p139, %p140
      %p142 = scmp.ne.s32.totalorder %s134, %s137
      %p143 = scmp.eq.s32.totalorder %s14, 0
      %p144 = por %p142, %p143
      %p145 = scmp.ne.s32.totalorder %s134, %s137
      %p146 = scmp.eq.s32.totalorder %s19, 1
      %p147 = por %p145, %p146
      %p148 = scmp.ne.s32.totalorder %s137, %s138
      %p149 = scmp.eq.s32.totalorder %s19, 0
      %p150 = por %p148, %p149
      %p151 = scmp.ne.s32.totalorder %s137, %s138
      %p152 = scmp.eq.s32.totalorder %s20, 1
      %p153 = por %p151, %p152
      %p155 = scmp.ne.s32.totalorder %s138, %s154
      %p156 = scmp.eq.s32.totalorder %s20, 0
      %p157 = por %p155, %p156
      %p158 = scmp.le.s32.totalorder 1, %s14
      %p159 = scmp.lt.s32.totalorder %s14, 3
      %p160 = pnand %p158, %p159
      %p161 = pneg %p160
      // Predicated region
      $region9: #{tpu_custom_call.1} parent=5 // pred_check
        _
      $region10: #{tpu_custom_call.1} parent=5 // pred_check_branch
        %163 = sbr.rel (%p160) target = $region12
      $region11: #{tpu_custom_call.1} parent=5 // pred_region
        %s164 = ssub.s32 %s14, 1
        // Predicated region
        $region13: #{tpu_custom_call.1} parent=11 // pred_check
          %p165 = pneg %p61
        $region14: #{tpu_custom_call.1} parent=11 // pred_check_branch
          %167 = sbr.rel (%p165) target = $region16
        $region15: #{tpu_custom_call.1} parent=11 // pred_region
          _
        $region16: #{tpu_custom_call.1} parent=11 // pred_fallthru
          _
        // Predicated region
        $region17: #{tpu_custom_call.1} parent=11 // pred_check
          %p168 = pneg %p82
        $region18: #{tpu_custom_call.1} parent=11 // pred_check_branch
          %170 = sbr.rel (%p168) target = $region20
        $region19: #{tpu_custom_call.1} parent=11 // pred_region
          _
        $region20: #{tpu_custom_call.1} parent=11 // pred_fallthru
          _
        // Predicated region
        $region21: #{tpu_custom_call.1} parent=11 // pred_check
          %p171 = pneg %p103
        $region22: #{tpu_custom_call.1} parent=11 // pred_check_branch
          %173 = sbr.rel (%p171) target = $region24
        $region23: #{tpu_custom_call.1} parent=11 // pred_region
          _
        $region24: #{tpu_custom_call.1} parent=11 // pred_fallthru
          _
        // Predicated region
        $region25: #{tpu_custom_call.1} parent=11 // pred_check
          %p174 = pneg %p124
        $region26: #{tpu_custom_call.1} parent=11 // pred_check_branch
          %176 = sbr.rel (%p174) target = $region28
        $region27: #{tpu_custom_call.1} parent=11 // pred_region
          _
        $region28: #{tpu_custom_call.1} parent=11 // pred_fallthru
          _
      $region12: #{tpu_custom_call.1} parent=5 // pred_fallthru
        _
      %p177 = scmp.lt.s32.totalorder %s14, 2
      // Predicated region
      $region29: #{tpu_custom_call.1} parent=5 // pred_check
        %p178 = pneg %p177
      $region30: #{tpu_custom_call.1} parent=5 // pred_check_branch
        %180 = sbr.rel (%p178) target = $region32
      $region31: #{tpu_custom_call.1} parent=5 // pred_region
        // Predicated region
        $region33: #{tpu_custom_call.1} parent=31 // pred_check
          %p181 = pneg %p34
        $region34: #{tpu_custom_call.1} parent=31 // pred_check_branch
          %183 = sbr.rel (%p181) target = $region36
        $region35: #{tpu_custom_call.1} parent=31 // pred_region
          %s184 = smul.u32 13, %s14
          %s185 = ssub.s32 25, %s184
          %p186 = scmp.lt.s32.totalorder %s185, 13
          %s187 = scalar_select %p186, %s185, 13
          %s188 = smul.u32 8, %s187
          %p189 = scmp.lt.s32.totalorder %s184, 24
          %s190 = scalar_select %p189, %s184, 24
          %s191 = smul.addr %s190, 8
          %s192 = scalar_lea.vmem %s0, %s191
          %s193 = smul.u32 13, %s14
          %s194 = ssub.s32 25, %s193
          %p195 = scmp.lt.s32.totalorder %s194, 13
          %s196 = scalar_select %p195, %s194, 13
          %s197 = smul.u32 8, %s196
        $region36: #{tpu_custom_call.1} parent=31 // pred_fallthru
          _
      $region32: #{tpu_custom_call.1} parent=5 // pred_fallthru
        _
      %p198 = scmp.le.s32.totalorder 1, %s14
      %p199 = scmp.lt.s32.totalorder %s14, 3
      %p200 = pnand %p198, %p199
      %p201 = pneg %p200
      // Predicated region
      $region37: #{tpu_custom_call.1} parent=5 // pred_check
        _
      $region38: #{tpu_custom_call.1} parent=5 // pred_check_branch
        %203 = sbr.rel (%p200) target = $region40
      $region39: #{tpu_custom_call.1} parent=5 // pred_region
        %s204 = ssub.s32 %s14, 1
        %s205 = smul.u32 13, %s19
        %s206 = ssub.s32 25, %s205
        %p207 = scmp.lt.s32.totalorder %s206, 13
        %s208 = scalar_select %p207, %s206, 13
        %s209 = smul.u32 8, %s208
        %p210 = scmp.lt.s32.totalorder %s205, 24
        %s211 = scalar_select %p210, %s205, 24
        %s212 = smul.addr %s211, 8
        %s213 = scalar_lea.vmem %s0, %s212
        %p214 = pneg %p40
        %p215 = pneg %p37
        %p216 = pneg %p61
        %p217 = pneg %p58
        %p218 = pneg %p82
        %p219 = pneg %p79
        %p220 = pneg %p103
        %p221 = pneg %p100
        %p222 = pneg %p124
        %p223 = pneg %p121
        %p224 = pneg %p150
        %p225 = pneg %p147
        %s226 = sand.u32 %s137, 1
        %s227 = scalar_lea.sflag [#allocation3], %s226
        %s228 = sand.u32 %s137, 1
        %s229 = smul.addr %s228, 728
        %s230 = scalar_lea.vmem [#allocation2], %s229
        %s231 = smul.u32 13, %s19
        %s232 = ssub.s32 25, %s231
        %p233 = scmp.lt.s32.totalorder %s232, 13
        %s234 = scalar_select %p233, %s232, 13
        %s235 = smul.u32 8, %s234
        %p236 = scmp.lt.s32.totalorder %s231, 24
        %s237 = scalar_select %p236, %s231, 24
        %s238 = smul.addr %s237, 8
        %s239 = scalar_lea.vmem %s0, %s238
        %s240 = smul.u32 13, %s19
        %s241 = ssub.s32 25, %s240
        %p242 = scmp.lt.s32.totalorder %s241, 13
        %s243 = scalar_select %p242, %s241, 13
        %s244 = smul.u32 8, %s243
        %s245 = smul.u32 13, %s19
        %s246 = ssub.s32 25, %s245
        %p247 = scmp.lt.s32.totalorder %s246, 13
        %s248 = scalar_select %p247, %s246, 13
        %s249 = smul.u32 8, %s248
        %s250 = smul.u32 %s249, 7
        %v252 = vld [vmem:[%s239] sm:$0xff]
        %v253 = vld [vmem:[%s239 + $0x8] sm:$0xff]
        %v254 = vld [vmem:[%s239 + $0x10] sm:$0xff]
        %v255 = vld [vmem:[%s239 + $0x18] sm:$0xff]
        %v256 = vld [vmem:[%s239 + $0x20] sm:$0xff]
        %v257 = vld [vmem:[%s239 + $0x28] sm:$0xff]
        %v258 = vld [vmem:[%s239 + $0x30] sm:$0xff]
        %v259 = vld [vmem:[%s239 + $0x38] sm:$0xff]
        %v260 = vld [vmem:[%s239 + $0x40] sm:$0xff]
        %v261 = vld [vmem:[%s239 + $0x48] sm:$0xff]
        %v262 = vld [vmem:[%s239 + $0x50] sm:$0xff]
        %v263 = vld [vmem:[%s239 + $0x58] sm:$0xff]
        %v264 = vld [vmem:[%s239 + $0x60] sm:$0xff]
        %v265 = vpack.c.bf16 %v253, %v252
        %v266 = vpack.c.bf16 %v255, %v254
        %v267 = vpack.c.bf16 %v257, %v256
        %v268 = vpack.c.bf16 %v259, %v258
        %v269 = vpack.c.bf16 %v261, %v260
        %v270 = vpack.c.bf16 %v263, %v262
        %v271 = vpack.c.bf16 %v264, %v264
        %v272 = vld [vmem:[%s1] sm:$0xff]
        %v273 = vld [vmem:[%s1 + $0x8] sm:$0xff]
        %v274 = vld [vmem:[%s1 + $0x10] sm:$0xff]
        %v275 = vld [vmem:[%s1 + $0x18] sm:$0xff]
        %v276 = vld [vmem:[%s1 + $0x20] sm:$0xff]
        %v277 = vld [vmem:[%s1 + $0x28] sm:$0xff]
        %v278 = vld [vmem:[%s1 + $0x30] sm:$0xff]
        %v279 = vld [vmem:[%s1 + $0x38] sm:$0xff]
        %v280 = vld [vmem:[%s2] sm:$0x3]
        %v282 = vperm.slane %v280, 0
        %v283 = vperm.slane %v280, 1
        %v294 = vunpack.c.l.b16 %v272
        %v295 = vunpack.c.h.b16 %v272
        %v296 = vunpack.c.l.b16 %v273
        %v297 = vunpack.c.h.b16 %v273
        %v298 = vunpack.c.l.b16 %v274
        %v299 = vunpack.c.h.b16 %v274
        %v300 = vunpack.c.l.b16 %v275
        %v301 = vunpack.c.h.b16 %v275
        %v302 = vunpack.c.l.b16 %v276
        %v303 = vunpack.c.h.b16 %v276
        %v304 = vunpack.c.l.b16 %v277
        %v305 = vunpack.c.h.b16 %v277
        %v306 = vunpack.c.l.b16 %v278
        %v307 = vunpack.c.h.b16 %v278
        %v308 = vunpack.c.l.b16 %v279
        %v309 = vunpack.c.h.b16 %v279
        %v310 = vpack.c.b16 %v296, %v294
        %v311 = vpack.c.b16 %v297, %v295
        %v312 = vpack.c.b16 %v300, %v298
        %v313 = vpack.c.b16 %v301, %v299
        %v314 = vpack.c.b16 %v304, %v302
        %v315 = vpack.c.b16 %v305, %v303
        %v316 = vpack.c.b16 %v308, %v306
        %v317 = vpack.c.b16 %v309, %v307
        %vm326 = vcmask 523264
        %v328 = vsel %vm326, %v265, 0
        %v331 = vsel %vm326, %v266, 0
        %v334 = vsel %vm326, %v267, 0
        %v337 = vsel %vm326, %v268, 0
        %v340 = vsel %vm326, %v269, 0
        %v343 = vsel %vm326, %v270, 0
        %v346 = vsel %vm326, %v271, 0
        %348 = vmatpush.bf16.msra.mxu0 0
        %349 = vmatpush.bf16.msra.mxu0 0
        %350 = vmatpush.bf16.msra.mxu0 0
        %351 = vmatpush.bf16.msra.mxu0 0
        %352 = vmatpush.bf16.msra.mxu0 %v316
        %353 = vmatpush.bf16.msra.mxu0 %v314
        %354 = vmatpush.bf16.msra.mxu0 %v312
        %355 = vmatpush.bf16.msra.mxu0 %v310
        %356 = vmatmul.bf16.gmra.mxu0 %v328
        %v357 = vpop.f32.mrf.mxu0
        %v358 = vadd.f32 %v282, %v357
        %v359 = vpop.f32.mrf.mxu0
        %v360 = vadd.f32 %v282, %v359
        %361 = vmatmul.bf16.gmra.mxu0 %v331
        %v362 = vpop.f32.mrf.mxu0
        %v363 = vadd.f32 %v282, %v362
        %v364 = vpop.f32.mrf.mxu0
        %v365 = vadd.f32 %v282, %v364
        %366 = vmatmul.bf16.gmra.mxu0 %v334
        %v367 = vpop.f32.mrf.mxu0
        %v368 = vadd.f32 %v282, %v367
        %v369 = vpop.f32.mrf.mxu0
        %v370 = vadd.f32 %v282, %v369
        %371 = vmatmul.bf16.gmra.mxu0 %v337
        %v372 = vpop.f32.mrf.mxu0
        %v373 = vadd.f32 %v282, %v372
        %v374 = vpop.f32.mrf.mxu0
        %v375 = vadd.f32 %v282, %v374
        %376 = vmatmul.bf16.gmra.mxu0 %v340
        %v377 = vpop.f32.mrf.mxu0
        %v378 = vadd.f32 %v282, %v377
        %v379 = vpop.f32.mrf.mxu0
        %v380 = vadd.f32 %v282, %v379
        %381 = vmatmul.bf16.gmra.mxu0 %v343
        %v382 = vpop.f32.mrf.mxu0
        %v383 = vadd.f32 %v282, %v382
        %v384 = vpop.f32.mrf.mxu0
        %v385 = vadd.f32 %v282, %v384
        %386 = vmatmul.bf16.gmra.mxu0 %v346
        %v387 = vpop.f32.mrf.mxu0
        %v388 = vadd.f32 %v282, %v387
        %v389 = vpop.f32.mrf.mxu0
        %390 = vdwg.mxu0
        %391 = vmatpush.bf16.msra.mxu0 0
        %392 = vmatpush.bf16.msra.mxu0 0
        %393 = vmatpush.bf16.msra.mxu0 0
        %394 = vmatpush.bf16.msra.mxu0 0
        %395 = vmatpush.bf16.msra.mxu0 %v317
        %396 = vmatpush.bf16.msra.mxu0 %v315
        %397 = vmatpush.bf16.msra.mxu0 %v313
        %398 = vmatpush.bf16.msra.mxu0 %v311
        %399 = vmatmul.bf16.gmra.mxu0 %v328
        %v400 = vpop.f32.mrf.mxu0
        %v401 = vadd.f32 %v283, %v400
        %v402 = vpop.f32.mrf.mxu0
        %v403 = vadd.f32 %v283, %v402
        %404 = vmatmul.bf16.gmra.mxu0 %v331
        %v405 = vpop.f32.mrf.mxu0
        %v406 = vadd.f32 %v283, %v405
        %v407 = vpop.f32.mrf.mxu0
        %v408 = vadd.f32 %v283, %v407
        %409 = vmatmul.bf16.gmra.mxu0 %v334
        %v410 = vpop.f32.mrf.mxu0
        %v411 = vadd.f32 %v283, %v410
        %v412 = vpop.f32.mrf.mxu0
        %v413 = vadd.f32 %v283, %v412
        %414 = vmatmul.bf16.gmra.mxu0 %v337
        %v415 = vpop.f32.mrf.mxu0
        %v416 = vadd.f32 %v283, %v415
        %v417 = vpop.f32.mrf.mxu0
        %v418 = vadd.f32 %v283, %v417
        %419 = vmatmul.bf16.gmra.mxu0 %v340
        %v420 = vpop.f32.mrf.mxu0
        %v421 = vadd.f32 %v283, %v420
        %v422 = vpop.f32.mrf.mxu0
        %v423 = vadd.f32 %v283, %v422
        %424 = vmatmul.bf16.gmra.mxu0 %v343
        %v425 = vpop.f32.mrf.mxu0
        %v426 = vadd.f32 %v283, %v425
        %v427 = vpop.f32.mrf.mxu0
        %v428 = vadd.f32 %v283, %v427
        %429 = vmatmul.bf16.gmra.mxu0 %v346
        %v430 = vpop.f32.mrf.mxu0
        %v431 = vadd.f32 %v283, %v430
        %v432 = vpop.f32.mrf.mxu0
        %433 = vdwg.mxu0
        %vm434 = vcmp.gt.f32.partialorder %v358, 0.0
        %vm435 = vcmp.gt.f32.partialorder %v401, 0.0
        %vm436 = vcmp.gt.f32.partialorder %v360, 0.0
        %vm437 = vcmp.gt.f32.partialorder %v403, 0.0
        %vm438 = vcmp.gt.f32.partialorder %v363, 0.0
        %vm439 = vcmp.gt.f32.partialorder %v406, 0.0
        %vm440 = vcmp.gt.f32.partialorder %v365, 0.0
        %vm441 = vcmp.gt.f32.partialorder %v408, 0.0
        %vm442 = vcmp.gt.f32.partialorder %v368, 0.0
        %vm443 = vcmp.gt.f32.partialorder %v411, 0.0
        %vm444 = vcmp.gt.f32.partialorder %v370, 0.0
        %vm445 = vcmp.gt.f32.partialorder %v413, 0.0
        %vm446 = vcmp.gt.f32.partialorder %v373, 0.0
        %vm447 = vcmp.gt.f32.partialorder %v416, 0.0
        %vm448 = vcmp.gt.f32.partialorder %v375, 0.0
        %vm449 = vcmp.gt.f32.partialorder %v418, 0.0
        %vm450 = vcmp.gt.f32.partialorder %v378, 0.0
        %vm451 = vcmp.gt.f32.partialorder %v421, 0.0
        %vm452 = vcmp.gt.f32.partialorder %v380, 0.0
        %vm453 = vcmp.gt.f32.partialorder %v423, 0.0
        %vm454 = vcmp.gt.f32.partialorder %v383, 0.0
        %vm455 = vcmp.gt.f32.partialorder %v426, 0.0
        %vm456 = vcmp.gt.f32.partialorder %v385, 0.0
        %vm457 = vcmp.gt.f32.partialorder %v428, 0.0
        %vm458 = vcmp.gt.f32.partialorder %v388, 0.0
        %vm459 = vcmp.gt.f32.partialorder %v431, 0.0
        %v460 = vmul.f32 %v358, 0.1
        %v461 = vmul.f32 %v401, 0.1
        %v462 = vmul.f32 %v360, 0.1
        %v463 = vmul.f32 %v403, 0.1
        %v464 = vmul.f32 %v363, 0.1
        %v465 = vmul.f32 %v406, 0.1
        %v466 = vmul.f32 %v365, 0.1
        %v467 = vmul.f32 %v408, 0.1
        %v468 = vmul.f32 %v368, 0.1
        %v469 = vmul.f32 %v411, 0.1
        %v470 = vmul.f32 %v370, 0.1
        %v471 = vmul.f32 %v413, 0.1
        %v472 = vmul.f32 %v373, 0.1
        %v473 = vmul.f32 %v416, 0.1
        %v474 = vmul.f32 %v375, 0.1
        %v475 = vmul.f32 %v418, 0.1
        %v476 = vmul.f32 %v378, 0.1
        %v477 = vmul.f32 %v421, 0.1
        %v478 = vmul.f32 %v380, 0.1
        %v479 = vmul.f32 %v423, 0.1
        %v480 = vmul.f32 %v383, 0.1
        %v481 = vmul.f32 %v426, 0.1
        %v482 = vmul.f32 %v385, 0.1
        %v483 = vmul.f32 %v428, 0.1
        %v484 = vmul.f32 %v388, 0.1
        %v485 = vmul.f32 %v431, 0.1
        %v486 = vsel %vm434, %v358, %v460
        %v487 = vsel %vm435, %v401, %v461
        %v488 = vsel %vm436, %v360, %v462
        %v489 = vsel %vm437, %v403, %v463
        %v490 = vsel %vm438, %v363, %v464
        %v491 = vsel %vm439, %v406, %v465
        %v492 = vsel %vm440, %v365, %v466
        %v493 = vsel %vm441, %v408, %v467
        %v494 = vsel %vm442, %v368, %v468
        %v495 = vsel %vm443, %v411, %v469
        %v496 = vsel %vm444, %v370, %v470
        %v497 = vsel %vm445, %v413, %v471
        %v498 = vsel %vm446, %v373, %v472
        %v499 = vsel %vm447, %v416, %v473
        %v500 = vsel %vm448, %v375, %v474
        %v501 = vsel %vm449, %v418, %v475
        %v502 = vsel %vm450, %v378, %v476
        %v503 = vsel %vm451, %v421, %v477
        %v504 = vsel %vm452, %v380, %v478
        %v505 = vsel %vm453, %v423, %v479
        %v506 = vsel %vm454, %v383, %v480
        %v507 = vsel %vm455, %v426, %v481
        %v508 = vsel %vm456, %v385, %v482
        %v509 = vsel %vm457, %v428, %v483
        %v510 = vsel %vm458, %v388, %v484
        %v511 = vsel %vm459, %v431, %v485
        %v512 = vpack.c.bf16 %v488, %v486
        %v513 = vpack.c.bf16 %v489, %v487
        %v514 = vpack.c.bf16 %v492, %v490
        %v515 = vpack.c.bf16 %v493, %v491
        %v516 = vpack.c.bf16 %v496, %v494
        %v517 = vpack.c.bf16 %v497, %v495
        %v518 = vpack.c.bf16 %v500, %v498
        %v519 = vpack.c.bf16 %v501, %v499
        %v520 = vpack.c.bf16 %v504, %v502
        %v521 = vpack.c.bf16 %v505, %v503
        %v522 = vpack.c.bf16 %v508, %v506
        %v523 = vpack.c.bf16 %v509, %v507
        %v524 = vpack.c.bf16 %v510, %v510
        %v525 = vpack.c.bf16 %v511, %v511
        %v526 = vld [vmem:[%s3] sm:$0xff]
        %v527 = vld [vmem:[%s3 + $0x8] sm:$0xff]
        %v528 = vld [vmem:[%s3 + $0x10] sm:$0xff]
        %v529 = vld [vmem:[%s3 + $0x18] sm:$0xf]
        %v530 = vld [vmem:[%s3 + $0x1c] sm:$0xff]
        %v531 = vld [vmem:[%s3 + $0x24] sm:$0xff]
        %v532 = vld [vmem:[%s3 + $0x2c] sm:$0xff]
        %v533 = vld [vmem:[%s3 + $0x34] sm:$0xf]
        %v534 = vld [vmem:[%s3 + $0x38] sm:$0xff]
        %v535 = vld [vmem:[%s3 + $0x40] sm:$0xff]
        %v536 = vld [vmem:[%s3 + $0x48] sm:$0xff]
        %v537 = vld [vmem:[%s3 + $0x50] sm:$0xf]
        %v538 = vld [vmem:[%s3 + $0x54] sm:$0xff]
        %v539 = vld [vmem:[%s3 + $0x5c] sm:$0xff]
        %v540 = vld [vmem:[%s3 + $0x64] sm:$0xff]
        %v541 = vld [vmem:[%s3 + $0x6c] sm:$0xf]
        %v542 = vld [vmem:[%s3 + $0x70] sm:$0xff]
        %v543 = vld [vmem:[%s3 + $0x78] sm:$0xff]
        %v544 = vld [vmem:[%s3 + $0x80] sm:$0xff]
        %v545 = vld [vmem:[%s3 + $0x88] sm:$0xf]
        %v546 = vld [vmem:[%s3 + $0x8c] sm:$0xff]
        %v547 = vld [vmem:[%s3 + $0x94] sm:$0xff]
        %v548 = vld [vmem:[%s3 + $0x9c] sm:$0xff]
        %v549 = vld [vmem:[%s3 + $0xa4] sm:$0xf]
        %v550 = vld [vmem:[%s3 + $0xa8] sm:$0xff]
        %v551 = vld [vmem:[%s3 + $0xb0] sm:$0xff]
        %v552 = vld [vmem:[%s3 + $0xb8] sm:$0xff]
        %v553 = vld [vmem:[%s3 + $0xc0] sm:$0xf]
        %v554 = vld [vmem:[%s3 + $0xc4] sm:$0xff]
        %v555 = vld [vmem:[%s3 + $0xcc] sm:$0xff]
        %v556 = vld [vmem:[%s3 + $0xd4] sm:$0xff]
        %v557 = vld [vmem:[%s3 + $0xdc] sm:$0xf]
        %v558 = vld [vmem:[%s3 + $0xe0] sm:$0xff]
        %v559 = vld [vmem:[%s3 + $0xe8] sm:$0xff]
        %v560 = vld [vmem:[%s3 + $0xf0] sm:$0xff]
        %v561 = vld [vmem:[%s3 + $0xf8] sm:$0xf]
        %v562 = vld [vmem:[%s3 + $0xfc] sm:$0xff]
        %v563 = vld [vmem:[%s3 + $0x104] sm:$0xff]
        %v564 = vld [vmem:[%s3 + $0x10c] sm:$0xff]
        %v565 = vld [vmem:[%s3 + $0x114] sm:$0xf]
        %v566 = vld [vmem:[%s3 + $0x118] sm:$0xff]
        %v567 = vld [vmem:[%s3 + $0x120] sm:$0xff]
        %v568 = vld [vmem:[%s3 + $0x128] sm:$0xff]
        %v569 = vld [vmem:[%s3 + $0x130] sm:$0xf]
        %v570 = vld [vmem:[%s3 + $0x134] sm:$0xff]
        %v571 = vld [vmem:[%s3 + $0x13c] sm:$0xff]
        %v572 = vld [vmem:[%s3 + $0x144] sm:$0xff]
        %v573 = vld [vmem:[%s3 + $0x14c] sm:$0xf]
        %v574 = vld [vmem:[%s3 + $0x150] sm:$0xff]
        %v575 = vld [vmem:[%s3 + $0x158] sm:$0xff]
        %v576 = vld [vmem:[%s3 + $0x160] sm:$0xff]
        %v577 = vld [vmem:[%s3 + $0x168] sm:$0xf]
        %v578 = vld [vmem:[%s3 + $0x16c] sm:$0xff]
        %v579 = vld [vmem:[%s3 + $0x174] sm:$0xff]
        %v580 = vld [vmem:[%s3 + $0x17c] sm:$0xff]
        %v581 = vld [vmem:[%s3 + $0x184] sm:$0xf]
        %v582 = vld [vmem:[%s3 + $0x188] sm:$0xff]
        %v583 = vld [vmem:[%s3 + $0x190] sm:$0xff]
        %v584 = vld [vmem:[%s3 + $0x198] sm:$0xff]
        %v585 = vld [vmem:[%s3 + $0x1a0] sm:$0xf]
        %v586 = vld [vmem:[%s3 + $0x1a4] sm:$0xff]
        %v587 = vld [vmem:[%s3 + $0x1ac] sm:$0xff]
        %v588 = vld [vmem:[%s3 + $0x1b4] sm:$0xff]
        %v589 = vld [vmem:[%s3 + $0x1bc] sm:$0xf]
        %v590 = vld [vmem:[%s3 + $0x1c0] sm:$0xff]
        %v591 = vld [vmem:[%s3 + $0x1c8] sm:$0xff]
        %v592 = vld [vmem:[%s3 + $0x1d0] sm:$0xff]
        %v593 = vld [vmem:[%s3 + $0x1d8] sm:$0xf]
        %v594 = vld [vmem:[%s3 + $0x1dc] sm:$0xff]
        %v595 = vld [vmem:[%s3 + $0x1e4] sm:$0xff]
        %v596 = vld [vmem:[%s3 + $0x1ec] sm:$0xff]
        %v597 = vld [vmem:[%s3 + $0x1f4] sm:$0xf]
        %v598 = vld [vmem:[%s3 + $0x1f8] sm:$0xff]
        %v599 = vld [vmem:[%s3 + $0x200] sm:$0xff]
        %v600 = vld [vmem:[%s3 + $0x208] sm:$0xff]
        %v601 = vld [vmem:[%s3 + $0x210] sm:$0xf]
        %v602 = vld [vmem:[%s3 + $0x214] sm:$0xff]
        %v603 = vld [vmem:[%s3 + $0x21c] sm:$0xff]
        %v604 = vld [vmem:[%s3 + $0x224] sm:$0xff]
        %v605 = vld [vmem:[%s3 + $0x22c] sm:$0xf]
        %v606 = vld [vmem:[%s3 + $0x230] sm:$0xff]
        %v607 = vld [vmem:[%s3 + $0x238] sm:$0xff]
        %v608 = vld [vmem:[%s3 + $0x240] sm:$0xff]
        %v609 = vld [vmem:[%s3 + $0x248] sm:$0xf]
        %v610 = vld [vmem:[%s3 + $0x24c] sm:$0xff]
        %v611 = vld [vmem:[%s3 + $0x254] sm:$0xff]
        %v612 = vld [vmem:[%s3 + $0x25c] sm:$0xff]
        %v613 = vld [vmem:[%s3 + $0x264] sm:$0xf]
        %v614 = vld [vmem:[%s3 + $0x268] sm:$0xff]
        %v615 = vld [vmem:[%s3 + $0x270] sm:$0xff]
        %v616 = vld [vmem:[%s3 + $0x278] sm:$0xff]
        %v617 = vld [vmem:[%s3 + $0x280] sm:$0xf]
        %v618 = vld [vmem:[%s3 + $0x284] sm:$0xff]
        %v619 = vld [vmem:[%s3 + $0x28c] sm:$0xff]
        %v620 = vld [vmem:[%s3 + $0x294] sm:$0xff]
        %v621 = vld [vmem:[%s3 + $0x29c] sm:$0xf]
        %v622 = vld [vmem:[%s3 + $0x2a0] sm:$0xff]
        %v623 = vld [vmem:[%s3 + $0x2a8] sm:$0xff]
        %v624 = vld [vmem:[%s3 + $0x2b0] sm:$0xff]
        %v625 = vld [vmem:[%s3 + $0x2b8] sm:$0xf]
        %v626 = vld [vmem:[%s3 + $0x2bc] sm:$0xff]
        %v627 = vld [vmem:[%s3 + $0x2c4] sm:$0xff]
        %v628 = vld [vmem:[%s3 + $0x2cc] sm:$0xff]
        %v629 = vld [vmem:[%s3 + $0x2d4] sm:$0xf]
        %v630 = vld [vmem:[%s3 + $0x2d8] sm:$0xff]
        %v631 = vld [vmem:[%s3 + $0x2e0] sm:$0xff]
        %v632 = vld [vmem:[%s3 + $0x2e8] sm:$0xff]
        %v633 = vld [vmem:[%s3 + $0x2f0] sm:$0xf]
        %v634 = vld [vmem:[%s3 + $0x2f4] sm:$0xff]
        %v635 = vld [vmem:[%s3 + $0x2fc] sm:$0xff]
        %v636 = vld [vmem:[%s3 + $0x304] sm:$0xff]
        %v637 = vld [vmem:[%s3 + $0x30c] sm:$0xf]
        %v638 = vld [vmem:[%s3 + $0x310] sm:$0xff]
        %v639 = vld [vmem:[%s3 + $0x318] sm:$0xff]
        %v640 = vld [vmem:[%s3 + $0x320] sm:$0xff]
        %v641 = vld [vmem:[%s3 + $0x328] sm:$0xf]
        %v642 = vld [vmem:[%s3 + $0x32c] sm:$0xff]
        %v643 = vld [vmem:[%s3 + $0x334] sm:$0xff]
        %v644 = vld [vmem:[%s3 + $0x33c] sm:$0xff]
        %v645 = vld [vmem:[%s3 + $0x344] sm:$0xf]
        %v646 = vld [vmem:[%s3 + $0x348] sm:$0xff]
        %v647 = vld [vmem:[%s3 + $0x350] sm:$0xff]
        %v648 = vld [vmem:[%s3 + $0x358] sm:$0xff]
        %v649 = vld [vmem:[%s3 + $0x360] sm:$0xf]
        %v650 = vld [vmem:[%s3 + $0x364] sm:$0xff]
        %v651 = vld [vmem:[%s3 + $0x36c] sm:$0xff]
        %v652 = vld [vmem:[%s3 + $0x374] sm:$0xff]
        %v653 = vld [vmem:[%s3 + $0x37c] sm:$0xf]
        %v654 = vld [vmem:[%s4] sm:$0x7f]
        %v656 = vperm.slane %v654, 0
        %v657 = vperm.slane %v654, 1
        %v658 = vperm.slane %v654, 2
        %v659 = vperm.slane %v654, 3
        %v660 = vperm.slane %v654, 4
        %v661 = vperm.slane %v654, 5
        %v662 = vperm.slane %v654, 6
        %v798 = vunpack.c.l.b16 %v526
        %v799 = vunpack.c.h.b16 %v526
        %v800 = vunpack.c.l.b16 %v527
        %v801 = vunpack.c.h.b16 %v527
        %v802 = vunpack.c.l.b16 %v528
        %v803 = vunpack.c.h.b16 %v528
        %v804 = vunpack.c.l.b16 %v529
        %v805 = vunpack.c.l.b16 %v530
        %v806 = vunpack.c.h.b16 %v530
        %v807 = vunpack.c.l.b16 %v531
        %v808 = vunpack.c.h.b16 %v531
        %v809 = vunpack.c.l.b16 %v532
        %v810 = vunpack.c.h.b16 %v532
        %v811 = vunpack.c.l.b16 %v533
        %v812 = vunpack.c.l.b16 %v534
        %v813 = vunpack.c.h.b16 %v534
        %v814 = vunpack.c.l.b16 %v535
        %v815 = vunpack.c.h.b16 %v535
        %v816 = vunpack.c.l.b16 %v536
        %v817 = vunpack.c.h.b16 %v536
        %v818 = vunpack.c.l.b16 %v537
        %v819 = vunpack.c.l.b16 %v538
        %v820 = vunpack.c.h.b16 %v538
        %v821 = vunpack.c.l.b16 %v539
        %v822 = vunpack.c.h.b16 %v539
        %v823 = vunpack.c.l.b16 %v540
        %v824 = vunpack.c.h.b16 %v540
        %v825 = vunpack.c.l.b16 %v541
        %v826 = vunpack.c.l.b16 %v542
        %v827 = vunpack.c.h.b16 %v542
        %v828 = vunpack.c.l.b16 %v543
        %v829 = vunpack.c.h.b16 %v543
        %v830 = vunpack.c.l.b16 %v544
        %v831 = vunpack.c.h.b16 %v544
        %v832 = vunpack.c.l.b16 %v545
        %v833 = vunpack.c.l.b16 %v546
        %v834 = vunpack.c.h.b16 %v546
        %v835 = vunpack.c.l.b16 %v547
        %v836 = vunpack.c.h.b16 %v547
        %v837 = vunpack.c.l.b16 %v548
        %v838 = vunpack.c.h.b16 %v548
        %v839 = vunpack.c.l.b16 %v549
        %v840 = vunpack.c.l.b16 %v550
        %v841 = vunpack.c.h.b16 %v550
        %v842 = vunpack.c.l.b16 %v551
        %v843 = vunpack.c.h.b16 %v551
        %v844 = vunpack.c.l.b16 %v552
        %v845 = vunpack.c.h.b16 %v552
        %v846 = vunpack.c.l.b16 %v553
        %v847 = vunpack.c.l.b16 %v554
        %v848 = vunpack.c.h.b16 %v554
        %v849 = vunpack.c.l.b16 %v555
        %v850 = vunpack.c.h.b16 %v555
        %v851 = vunpack.c.l.b16 %v556
        %v852 = vunpack.c.h.b16 %v556
        %v853 = vunpack.c.l.b16 %v557
        %v854 = vunpack.c.l.b16 %v558
        %v855 = vunpack.c.h.b16 %v558
        %v856 = vunpack.c.l.b16 %v559
        %v857 = vunpack.c.h.b16 %v559
        %v858 = vunpack.c.l.b16 %v560
        %v859 = vunpack.c.h.b16 %v560
        %v860 = vunpack.c.l.b16 %v561
        %v861 = vunpack.c.l.b16 %v562
        %v862 = vunpack.c.h.b16 %v562
        %v863 = vunpack.c.l.b16 %v563
        %v864 = vunpack.c.h.b16 %v563
        %v865 = vunpack.c.l.b16 %v564
        %v866 = vunpack.c.h.b16 %v564
        %v867 = vunpack.c.l.b16 %v565
        %v868 = vunpack.c.l.b16 %v566
        %v869 = vunpack.c.h.b16 %v566
        %v870 = vunpack.c.l.b16 %v567
        %v871 = vunpack.c.h.b16 %v567
        %v872 = vunpack.c.l.b16 %v568
        %v873 = vunpack.c.h.b16 %v568
        %v874 = vunpack.c.l.b16 %v569
        %v875 = vunpack.c.l.b16 %v570
        %v876 = vunpack.c.h.b16 %v570
        %v877 = vunpack.c.l.b16 %v571
        %v878 = vunpack.c.h.b16 %v571
        %v879 = vunpack.c.l.b16 %v572
        %v880 = vunpack.c.h.b16 %v572
        %v881 = vunpack.c.l.b16 %v573
        %v882 = vunpack.c.l.b16 %v574
        %v883 = vunpack.c.h.b16 %v574
        %v884 = vunpack.c.l.b16 %v575
        %v885 = vunpack.c.h.b16 %v575
        %v886 = vunpack.c.l.b16 %v576
        %v887 = vunpack.c.h.b16 %v576
        %v888 = vunpack.c.l.b16 %v577
        %v889 = vunpack.c.l.b16 %v578
        %v890 = vunpack.c.h.b16 %v578
        %v891 = vunpack.c.l.b16 %v579
        %v892 = vunpack.c.h.b16 %v579
        %v893 = vunpack.c.l.b16 %v580
        %v894 = vunpack.c.h.b16 %v580
        %v895 = vunpack.c.l.b16 %v581
        %v896 = vunpack.c.l.b16 %v582
        %v897 = vunpack.c.h.b16 %v582
        %v898 = vunpack.c.l.b16 %v583
        %v899 = vunpack.c.h.b16 %v583
        %v900 = vunpack.c.l.b16 %v584
        %v901 = vunpack.c.h.b16 %v584
        %v902 = vunpack.c.l.b16 %v585
        %v903 = vunpack.c.l.b16 %v586
        %v904 = vunpack.c.h.b16 %v586
        %v905 = vunpack.c.l.b16 %v587
        %v906 = vunpack.c.h.b16 %v587
        %v907 = vunpack.c.l.b16 %v588
        %v908 = vunpack.c.h.b16 %v588
        %v909 = vunpack.c.l.b16 %v589
        %v910 = vunpack.c.l.b16 %v590
        %v911 = vunpack.c.h.b16 %v590
        %v912 = vunpack.c.l.b16 %v591
        %v913 = vunpack.c.h.b16 %v591
        %v914 = vunpack.c.l.b16 %v592
        %v915 = vunpack.c.h.b16 %v592
        %v916 = vunpack.c.l.b16 %v593
        %v917 = vunpack.c.l.b16 %v594
        %v918 = vunpack.c.h.b16 %v594
        %v919 = vunpack.c.l.b16 %v595
        %v920 = vunpack.c.h.b16 %v595
        %v921 = vunpack.c.l.b16 %v596
        %v922 = vunpack.c.h.b16 %v596
        %v923 = vunpack.c.l.b16 %v597
        %v924 = vunpack.c.l.b16 %v598
        %v925 = vunpack.c.h.b16 %v598
        %v926 = vunpack.c.l.b16 %v599
        %v927 = vunpack.c.h.b16 %v599
        %v928 = vunpack.c.l.b16 %v600
        %v929 = vunpack.c.h.b16 %v600
        %v930 = vunpack.c.l.b16 %v601
        %v931 = vunpack.c.l.b16 %v602
        %v932 = vunpack.c.h.b16 %v602
        %v933 = vunpack.c.l.b16 %v603
        %v934 = vunpack.c.h.b16 %v603
        %v935 = vunpack.c.l.b16 %v604
        %v936 = vunpack.c.h.b16 %v604
        %v937 = vunpack.c.l.b16 %v605
        %v938 = vunpack.c.l.b16 %v606
        %v939 = vunpack.c.h.b16 %v606
        %v940 = vunpack.c.l.b16 %v607
        %v941 = vunpack.c.h.b16 %v607
        %v942 = vunpack.c.l.b16 %v608
        %v943 = vunpack.c.h.b16 %v608
        %v944 = vunpack.c.l.b16 %v609
        %v945 = vunpack.c.l.b16 %v610
        %v946 = vunpack.c.h.b16 %v610
        %v947 = vunpack.c.l.b16 %v611
        %v948 = vunpack.c.h.b16 %v611
        %v949 = vunpack.c.l.b16 %v612
        %v950 = vunpack.c.h.b16 %v612
        %v951 = vunpack.c.l.b16 %v613
        %v952 = vunpack.c.l.b16 %v614
        %v953 = vunpack.c.h.b16 %v614
        %v954 = vunpack.c.l.b16 %v615
        %v955 = vunpack.c.h.b16 %v615
        %v956 = vunpack.c.l.b16 %v616
        %v957 = vunpack.c.h.b16 %v616
        %v958 = vunpack.c.l.b16 %v617
        %v959 = vunpack.c.l.b16 %v618
        %v960 = vunpack.c.h.b16 %v618
        %v961 = vunpack.c.l.b16 %v619
        %v962 = vunpack.c.h.b16 %v619
        %v963 = vunpack.c.l.b16 %v620
        %v964 = vunpack.c.h.b16 %v620
        %v965 = vunpack.c.l.b16 %v621
        %v966 = vunpack.c.l.b16 %v622
        %v967 = vunpack.c.h.b16 %v622
        %v968 = vunpack.c.l.b16 %v623
        %v969 = vunpack.c.h.b16 %v623
        %v970 = vunpack.c.l.b16 %v624
        %v971 = vunpack.c.h.b16 %v624
        %v972 = vunpack.c.l.b16 %v625
        %v973 = vunpack.c.l.b16 %v626
        %v974 = vunpack.c.h.b16 %v626
        %v975 = vunpack.c.l.b16 %v627
        %v976 = vunpack.c.h.b16 %v627
        %v977 = vunpack.c.l.b16 %v628
        %v978 = vunpack.c.h.b16 %v628
        %v979 = vunpack.c.l.b16 %v629
        %v980 = vunpack.c.l.b16 %v630
        %v981 = vunpack.c.h.b16 %v630
        %v982 = vunpack.c.l.b16 %v631
        %v983 = vunpack.c.h.b16 %v631
        %v984 = vunpack.c.l.b16 %v632
        %v985 = vunpack.c.h.b16 %v632
        %v986 = vunpack.c.l.b16 %v633
        %v987 = vunpack.c.l.b16 %v634
        %v988 = vunpack.c.h.b16 %v634
        %v989 = vunpack.c.l.b16 %v635
        %v990 = vunpack.c.h.b16 %v635
        %v991 = vunpack.c.l.b16 %v636
        %v992 = vunpack.c.h.b16 %v636
        %v993 = vunpack.c.l.b16 %v637
        %v994 = vunpack.c.l.b16 %v638
        %v995 = vunpack.c.h.b16 %v638
        %v996 = vunpack.c.l.b16 %v639
        %v997 = vunpack.c.h.b16 %v639
        %v998 = vunpack.c.l.b16 %v640
        %v999 = vunpack.c.h.b16 %v640
        %v1000 = vunpack.c.l.b16 %v641
        %v1001 = vunpack.c.l.b16 %v642
        %v1002 = vunpack.c.h.b16 %v642
        %v1003 = vunpack.c.l.b16 %v643
        %v1004 = vunpack.c.h.b16 %v643
        %v1005 = vunpack.c.l.b16 %v644
        %v1006 = vunpack.c.h.b16 %v644
        %v1007 = vunpack.c.l.b16 %v645
        %v1008 = vunpack.c.l.b16 %v646
        %v1009 = vunpack.c.h.b16 %v646
        %v1010 = vunpack.c.l.b16 %v647
        %v1011 = vunpack.c.h.b16 %v647
        %v1012 = vunpack.c.l.b16 %v648
        %v1013 = vunpack.c.h.b16 %v648
        %v1014 = vunpack.c.l.b16 %v649
        %v1015 = vunpack.c.l.b16 %v650
        %v1016 = vunpack.c.h.b16 %v650
        %v1017 = vunpack.c.l.b16 %v651
        %v1018 = vunpack.c.h.b16 %v651
        %v1019 = vunpack.c.l.b16 %v652
        %v1020 = vunpack.c.h.b16 %v652
        %v1021 = vunpack.c.l.b16 %v653
        %v1022 = vpack.c.b16 %v805, %v798
        %v1023 = vpack.c.b16 %v806, %v799
        %v1024 = vpack.c.b16 %v807, %v800
        %v1025 = vpack.c.b16 %v808, %v801
        %v1026 = vpack.c.b16 %v809, %v802
        %v1027 = vpack.c.b16 %v810, %v803
        %v1028 = vpack.c.b16 %v811, %v804
        %v1029 = vpack.c.b16 %v819, %v812
        %v1030 = vpack.c.b16 %v820, %v813
        %v1031 = vpack.c.b16 %v821, %v814
        %v1032 = vpack.c.b16 %v822, %v815
        %v1033 = vpack.c.b16 %v823, %v816
        %v1034 = vpack.c.b16 %v824, %v817
        %v1035 = vpack.c.b16 %v825, %v818
        %v1036 = vpack.c.b16 %v833, %v826
        %v1037 = vpack.c.b16 %v834, %v827
        %v1038 = vpack.c.b16 %v835, %v828
        %v1039 = vpack.c.b16 %v836, %v829
        %v1040 = vpack.c.b16 %v837, %v830
        %v1041 = vpack.c.b16 %v838, %v831
        %v1042 = vpack.c.b16 %v839, %v832
        %v1043 = vpack.c.b16 %v847, %v840
        %v1044 = vpack.c.b16 %v848, %v841
        %v1045 = vpack.c.b16 %v849, %v842
        %v1046 = vpack.c.b16 %v850, %v843
        %v1047 = vpack.c.b16 %v851, %v844
        %v1048 = vpack.c.b16 %v852, %v845
        %v1049 = vpack.c.b16 %v853, %v846
        %v1050 = vpack.c.b16 %v861, %v854
        %v1051 = vpack.c.b16 %v862, %v855
        %v1052 = vpack.c.b16 %v863, %v856
        %v1053 = vpack.c.b16 %v864, %v857
        %v1054 = vpack.c.b16 %v865, %v858
        %v1055 = vpack.c.b16 %v866, %v859
        %v1056 = vpack.c.b16 %v867, %v860
        %v1057 = vpack.c.b16 %v875, %v868
        %v1058 = vpack.c.b16 %v876, %v869
        %v1059 = vpack.c.b16 %v877, %v870
        %v1060 = vpack.c.b16 %v878, %v871
        %v1061 = vpack.c.b16 %v879, %v872
        %v1062 = vpack.c.b16 %v880, %v873
        %v1063 = vpack.c.b16 %v881, %v874
        %v1064 = vpack.c.b16 %v889, %v882
        %v1065 = vpack.c.b16 %v890, %v883
        %v1066 = vpack.c.b16 %v891, %v884
        %v1067 = vpack.c.b16 %v892, %v885
        %v1068 = vpack.c.b16 %v893, %v886
        %v1069 = vpack.c.b16 %v894, %v887
        %v1070 = vpack.c.b16 %v895, %v888
        %v1071 = vpack.c.b16 %v903, %v896
        %v1072 = vpack.c.b16 %v904, %v897
        %v1073 = vpack.c.b16 %v905, %v898
        %v1074 = vpack.c.b16 %v906, %v899
        %v1075 = vpack.c.b16 %v907, %v900
        %v1076 = vpack.c.b16 %v908, %v901
        %v1077 = vpack.c.b16 %v909, %v902
        %v1078 = vpack.c.b16 %v917, %v910
        %v1079 = vpack.c.b16 %v918, %v911
        %v1080 = vpack.c.b16 %v919, %v912
        %v1081 = vpack.c.b16 %v920, %v913
        %v1082 = vpack.c.b16 %v921, %v914
        %v1083 = vpack.c.b16 %v922, %v915
        %v1084 = vpack.c.b16 %v923, %v916
        %v1085 = vpack.c.b16 %v931, %v924
        %v1086 = vpack.c.b16 %v932, %v925
        %v1087 = vpack.c.b16 %v933, %v926
        %v1088 = vpack.c.b16 %v934, %v927
        %v1089 = vpack.c.b16 %v935, %v928
        %v1090 = vpack.c.b16 %v936, %v929
        %v1091 = vpack.c.b16 %v937, %v930
        %v1092 = vpack.c.b16 %v945, %v938
        %v1093 = vpack.c.b16 %v946, %v939
        %v1094 = vpack.c.b16 %v947, %v940
        %v1095 = vpack.c.b16 %v948, %v941
        %v1096 = vpack.c.b16 %v949, %v942
        %v1097 = vpack.c.b16 %v950, %v943
        %v1098 = vpack.c.b16 %v951, %v944
        %v1099 = vpack.c.b16 %v959, %v952
        %v1100 = vpack.c.b16 %v960, %v953
        %v1101 = vpack.c.b16 %v961, %v954
        %v1102 = vpack.c.b16 %v962, %v955
        %v1103 = vpack.c.b16 %v963, %v956
        %v1104 = vpack.c.b16 %v964, %v957
        %v1105 = vpack.c.b16 %v965, %v958
        %v1106 = vpack.c.b16 %v973, %v966
        %v1107 = vpack.c.b16 %v974, %v967
        %v1108 = vpack.c.b16 %v975, %v968
        %v1109 = vpack.c.b16 %v976, %v969
        %v1110 = vpack.c.b16 %v977, %v970
        %v1111 = vpack.c.b16 %v978, %v971
        %v1112 = vpack.c.b16 %v979, %v972
        %v1113 = vpack.c.b16 %v987, %v980
        %v1114 = vpack.c.b16 %v988, %v981
        %v1115 = vpack.c.b16 %v989, %v982
        %v1116 = vpack.c.b16 %v990, %v983
        %v1117 = vpack.c.b16 %v991, %v984
        %v1118 = vpack.c.b16 %v992, %v985
        %v1119 = vpack.c.b16 %v993, %v986
        %v1120 = vpack.c.b16 %v1001, %v994
        %v1121 = vpack.c.b16 %v1002, %v995
        %v1122 = vpack.c.b16 %v1003, %v996
        %v1123 = vpack.c.b16 %v1004, %v997
        %v1124 = vpack.c.b16 %v1005, %v998
        %v1125 = vpack.c.b16 %v1006, %v999
        %v1126 = vpack.c.b16 %v1007, %v1000
        %v1127 = vpack.c.b16 %v1015, %v1008
        %v1128 = vpack.c.b16 %v1016, %v1009
        %v1129 = vpack.c.b16 %v1017, %v1010
        %v1130 = vpack.c.b16 %v1018, %v1011
        %v1131 = vpack.c.b16 %v1019, %v1012
        %v1132 = vpack.c.b16 %v1020, %v1013
        %v1133 = vpack.c.b16 %v1021, %v1014
        %1246 = vmatpush.bf16.msra.mxu0 %v1071
        %1247 = vmatpush.bf16.msra.mxu0 %v1064
        %1248 = vmatpush.bf16.msra.mxu0 %v1057
        %1249 = vmatpush.bf16.msra.mxu0 %v1050
        %1250 = vmatpush.bf16.msra.mxu0 %v1043
        %1251 = vmatpush.bf16.msra.mxu0 %v1036
        %1252 = vmatpush.bf16.msra.mxu0 %v1029
        %1253 = vmatpush.bf16.msra.mxu0 %v1022
        %1254 = vmatmul.bf16.gmra.mxu0 %v512
        %v1255 = vpop.f32.mrf.mxu0
        %v1256 = vadd.f32 %v656, %v1255
        %v1257 = vpop.f32.mrf.mxu0
        %v1258 = vadd.f32 %v656, %v1257
        %1259 = vmatmul.bf16.gmra.mxu0 %v514
        %v1260 = vpop.f32.mrf.mxu0
        %v1261 = vadd.f32 %v656, %v1260
        %v1262 = vpop.f32.mrf.mxu0
        %v1263 = vadd.f32 %v656, %v1262
        %1264 = vmatmul.bf16.gmra.mxu0 %v516
        %v1265 = vpop.f32.mrf.mxu0
        %v1266 = vadd.f32 %v656, %v1265
        %v1267 = vpop.f32.mrf.mxu0
        %v1268 = vadd.f32 %v656, %v1267
        %1269 = vmatmul.bf16.gmra.mxu0 %v518
        %v1270 = vpop.f32.mrf.mxu0
        %v1271 = vadd.f32 %v656, %v1270
        %v1272 = vpop.f32.mrf.mxu0
        %v1273 = vadd.f32 %v656, %v1272
        %1274 = vmatmul.bf16.gmra.mxu0 %v520
        %v1275 = vpop.f32.mrf.mxu0
        %v1276 = vadd.f32 %v656, %v1275
        %v1277 = vpop.f32.mrf.mxu0
        %v1278 = vadd.f32 %v656, %v1277
        %1279 = vmatmul.bf16.gmra.mxu0 %v522
        %v1280 = vpop.f32.mrf.mxu0
        %v1281 = vadd.f32 %v656, %v1280
        %v1282 = vpop.f32.mrf.mxu0
        %v1283 = vadd.f32 %v656, %v1282
        %1284 = vmatmul.bf16.gmra.mxu0 %v524
        %v1285 = vpop.f32.mrf.mxu0
        %v1286 = vadd.f32 %v656, %v1285
        %v1287 = vpop.f32.mrf.mxu0
        %1288 = vdwg.mxu0
        %1289 = vmatpush.bf16.msra.mxu0 %v1127
        %1290 = vmatpush.bf16.msra.mxu0 %v1120
        %1291 = vmatpush.bf16.msra.mxu0 %v1113
        %1292 = vmatpush.bf16.msra.mxu0 %v1106
        %1293 = vmatpush.bf16.msra.mxu0 %v1099
        %1294 = vmatpush.bf16.msra.mxu0 %v1092
        %1295 = vmatpush.bf16.msra.mxu0 %v1085
        %1296 = vmatpush.bf16.msra.mxu0 %v1078
        %1297 = vmatmul.bf16.gmra.mxu0 %v513
        %v1298 = vpop.f32.mrf.mxu0
        %v1299 = vadd.f32 %v1256, %v1298
        %v1300 = vpop.f32.mrf.mxu0
        %v1301 = vadd.f32 %v1258, %v1300
        %1302 = vmatmul.bf16.gmra.mxu0 %v515
        %v1303 = vpop.f32.mrf.mxu0
        %v1304 = vadd.f32 %v1261, %v1303
        %v1305 = vpop.f32.mrf.mxu0
        %v1306 = vadd.f32 %v1263, %v1305
        %1307 = vmatmul.bf16.gmra.mxu0 %v517
        %v1308 = vpop.f32.mrf.mxu0
        %v1309 = vadd.f32 %v1266, %v1308
        %v1310 = vpop.f32.mrf.mxu0
        %v1311 = vadd.f32 %v1268, %v1310
        %1312 = vmatmul.bf16.gmra.mxu0 %v519
        %v1313 = vpop.f32.mrf.mxu0
        %v1314 = vadd.f32 %v1271, %v1313
        %v1315 = vpop.f32.mrf.mxu0
        %v1316 = vadd.f32 %v1273, %v1315
        %1317 = vmatmul.bf16.gmra.mxu0 %v521
        %v1318 = vpop.f32.mrf.mxu0
        %v1319 = vadd.f32 %v1276, %v1318
        %v1320 = vpop.f32.mrf.mxu0
        %v1321 = vadd.f32 %v1278, %v1320
        %1322 = vmatmul.bf16.gmra.mxu0 %v523
        %v1323 = vpop.f32.mrf.mxu0
        %v1324 = vadd.f32 %v1281, %v1323
        %v1325 = vpop.f32.mrf.mxu0
        %v1326 = vadd.f32 %v1283, %v1325
        %1327 = vmatmul.bf16.gmra.mxu0 %v525
        %v1328 = vpop.f32.mrf.mxu0
        %v1329 = vadd.f32 %v1286, %v1328
        %v1330 = vpop.f32.mrf.mxu0
        %1331 = vdwg.mxu0
        %1332 = vmatpush.bf16.msra.mxu0 %v1072
        %1333 = vmatpush.bf16.msra.mxu0 %v1065
        %1334 = vmatpush.bf16.msra.mxu0 %v1058
        %1335 = vmatpush.bf16.msra.mxu0 %v1051
        %1336 = vmatpush.bf16.msra.mxu0 %v1044
        %1337 = vmatpush.bf16.msra.mxu0 %v1037
        %1338 = vmatpush.bf16.msra.mxu0 %v1030
        %1339 = vmatpush.bf16.msra.mxu0 %v1023
        %1340 = vmatmul.bf16.gmra.mxu0 %v512
        %v1341 = vpop.f32.mrf.mxu0
        %v1342 = vadd.f32 %v657, %v1341
        %v1343 = vpop.f32.mrf.mxu0
        %v1344 = vadd.f32 %v657, %v1343
        %1345 = vmatmul.bf16.gmra.mxu0 %v514
        %v1346 = vpop.f32.mrf.mxu0
        %v1347 = vadd.f32 %v657, %v1346
        %v1348 = vpop.f32.mrf.mxu0
        %v1349 = vadd.f32 %v657, %v1348
        %1350 = vmatmul.bf16.gmra.mxu0 %v516
        %v1351 = vpop.f32.mrf.mxu0
        %v1352 = vadd.f32 %v657, %v1351
        %v1353 = vpop.f32.mrf.mxu0
        %v1354 = vadd.f32 %v657, %v1353
        %1355 = vmatmul.bf16.gmra.mxu0 %v518
        %v1356 = vpop.f32.mrf.mxu0
        %v1357 = vadd.f32 %v657, %v1356
        %v1358 = vpop.f32.mrf.mxu0
        %v1359 = vadd.f32 %v657, %v1358
        %1360 = vmatmul.bf16.gmra.mxu0 %v520
        %v1361 = vpop.f32.mrf.mxu0
        %v1362 = vadd.f32 %v657, %v1361
        %v1363 = vpop.f32.mrf.mxu0
        %v1364 = vadd.f32 %v657, %v1363
        %1365 = vmatmul.bf16.gmra.mxu0 %v522
        %v1366 = vpop.f32.mrf.mxu0
        %v1367 = vadd.f32 %v657, %v1366
        %v1368 = vpop.f32.mrf.mxu0
        %v1369 = vadd.f32 %v657, %v1368
        %1370 = vmatmul.bf16.gmra.mxu0 %v524
        %v1371 = vpop.f32.mrf.mxu0
        %v1372 = vadd.f32 %v657, %v1371
        %v1373 = vpop.f32.mrf.mxu0
        %1374 = vdwg.mxu0
        %1375 = vmatpush.bf16.msra.mxu0 %v1128
        %1376 = vmatpush.bf16.msra.mxu0 %v1121
        %1377 = vmatpush.bf16.msra.mxu0 %v1114
        %1378 = vmatpush.bf16.msra.mxu0 %v1107
        %1379 = vmatpush.bf16.msra.mxu0 %v1100
        %1380 = vmatpush.bf16.msra.mxu0 %v1093
        %1381 = vmatpush.bf16.msra.mxu0 %v1086
        %1382 = vmatpush.bf16.msra.mxu0 %v1079
        %1383 = vmatmul.bf16.gmra.mxu0 %v513
        %v1384 = vpop.f32.mrf.mxu0
        %v1385 = vadd.f32 %v1342, %v1384
        %v1386 = vpop.f32.mrf.mxu0
        %v1387 = vadd.f32 %v1344, %v1386
        %1388 = vmatmul.bf16.gmra.mxu0 %v515
        %v1389 = vpop.f32.mrf.mxu0
        %v1390 = vadd.f32 %v1347, %v1389
        %v1391 = vpop.f32.mrf.mxu0
        %v1392 = vadd.f32 %v1349, %v1391
        %1393 = vmatmul.bf16.gmra.mxu0 %v517
        %v1394 = vpop.f32.mrf.mxu0
        %v1395 = vadd.f32 %v1352, %v1394
        %v1396 = vpop.f32.mrf.mxu0
        %v1397 = vadd.f32 %v1354, %v1396
        %1398 = vmatmul.bf16.gmra.mxu0 %v519
        %v1399 = vpop.f32.mrf.mxu0
        %v1400 = vadd.f32 %v1357, %v1399
        %v1401 = vpop.f32.mrf.mxu0
        %v1402 = vadd.f32 %v1359, %v1401
        %1403 = vmatmul.bf16.gmra.mxu0 %v521
        %v1404 = vpop.f32.mrf.mxu0
        %v1405 = vadd.f32 %v1362, %v1404
        %v1406 = vpop.f32.mrf.mxu0
        %v1407 = vadd.f32 %v1364, %v1406
        %1408 = vmatmul.bf16.gmra.mxu0 %v523
        %v1409 = vpop.f32.mrf.mxu0
        %v1410 = vadd.f32 %v1367, %v1409
        %v1411 = vpop.f32.mrf.mxu0
        %v1412 = vadd.f32 %v1369, %v1411
        %1413 = vmatmul.bf16.gmra.mxu0 %v525
        %v1414 = vpop.f32.mrf.mxu0
        %v1415 = vadd.f32 %v1372, %v1414
        %v1416 = vpop.f32.mrf.mxu0
        %1417 = vdwg.mxu0
        %1418 = vmatpush.bf16.msra.mxu0 %v1073
        %1419 = vmatpush.bf16.msra.mxu0 %v1066
        %1420 = vmatpush.bf16.msra.mxu0 %v1059
        %1421 = vmatpush.bf16.msra.mxu0 %v1052
        %1422 = vmatpush.bf16.msra.mxu0 %v1045
        %1423 = vmatpush.bf16.msra.mxu0 %v1038
        %1424 = vmatpush.bf16.msra.mxu0 %v1031
        %1425 = vmatpush.bf16.msra.mxu0 %v1024
        %1426 = vmatmul.bf16.gmra.mxu0 %v512
        %v1427 = vpop.f32.mrf.mxu0
        %v1428 = vadd.f32 %v658, %v1427
        %v1429 = vpop.f32.mrf.mxu0
        %v1430 = vadd.f32 %v658, %v1429
        %1431 = vmatmul.bf16.gmra.mxu0 %v514
        %v1432 = vpop.f32.mrf.mxu0
        %v1433 = vadd.f32 %v658, %v1432
        %v1434 = vpop.f32.mrf.mxu0
        %v1435 = vadd.f32 %v658, %v1434
        %1436 = vmatmul.bf16.gmra.mxu0 %v516
        %v1437 = vpop.f32.mrf.mxu0
        %v1438 = vadd.f32 %v658, %v1437
        %v1439 = vpop.f32.mrf.mxu0
        %v1440 = vadd.f32 %v658, %v1439
        %1441 = vmatmul.bf16.gmra.mxu0 %v518
        %v1442 = vpop.f32.mrf.mxu0
        %v1443 = vadd.f32 %v658, %v1442
        %v1444 = vpop.f32.mrf.mxu0
        %v1445 = vadd.f32 %v658, %v1444
        %1446 = vmatmul.bf16.gmra.mxu0 %v520
        %v1447 = vpop.f32.mrf.mxu0
        %v1448 = vadd.f32 %v658, %v1447
        %v1449 = vpop.f32.mrf.mxu0
        %v1450 = vadd.f32 %v658, %v1449
        %1451 = vmatmul.bf16.gmra.mxu0 %v522
        %v1452 = vpop.f32.mrf.mxu0
        %v1453 = vadd.f32 %v658, %v1452
        %v1454 = vpop.f32.mrf.mxu0
        %v1455 = vadd.f32 %v658, %v1454
        %1456 = vmatmul.bf16.gmra.mxu0 %v524
        %v1457 = vpop.f32.mrf.mxu0
        %v1458 = vadd.f32 %v658, %v1457
        %v1459 = vpop.f32.mrf.mxu0
        %1460 = vdwg.mxu0
        %1461 = vmatpush.bf16.msra.mxu0 %v1129
        %1462 = vmatpush.bf16.msra.mxu0 %v1122
        %1463 = vmatpush.bf16.msra.mxu0 %v1115
        %1464 = vmatpush.bf16.msra.mxu0 %v1108
        %1465 = vmatpush.bf16.msra.mxu0 %v1101
        %1466 = vmatpush.bf16.msra.mxu0 %v1094
        %1467 = vmatpush.bf16.msra.mxu0 %v1087
        %1468 = vmatpush.bf16.msra.mxu0 %v1080
        %1469 = vmatmul.bf16.gmra.mxu0 %v513
        %v1470 = vpop.f32.mrf.mxu0
        %v1471 = vadd.f32 %v1428, %v1470
        %v1472 = vpop.f32.mrf.mxu0
        %v1473 = vadd.f32 %v1430, %v1472
        %1474 = vmatmul.bf16.gmra.mxu0 %v515
        %v1475 = vpop.f32.mrf.mxu0
        %v1476 = vadd.f32 %v1433, %v1475
        %v1477 = vpop.f32.mrf.mxu0
        %v1478 = vadd.f32 %v1435, %v1477
        %1479 = vmatmul.bf16.gmra.mxu0 %v517
        %v1480 = vpop.f32.mrf.mxu0
        %v1481 = vadd.f32 %v1438, %v1480
        %v1482 = vpop.f32.mrf.mxu0
        %v1483 = vadd.f32 %v1440, %v1482
        %1484 = vmatmul.bf16.gmra.mxu0 %v519
        %v1485 = vpop.f32.mrf.mxu0
        %v1486 = vadd.f32 %v1443, %v1485
        %v1487 = vpop.f32.mrf.mxu0
        %v1488 = vadd.f32 %v1445, %v1487
        %1489 = vmatmul.bf16.gmra.mxu0 %v521
        %v1490 = vpop.f32.mrf.mxu0
        %v1491 = vadd.f32 %v1448, %v1490
        %v1492 = vpop.f32.mrf.mxu0
        %v1493 = vadd.f32 %v1450, %v1492
        %1494 = vmatmul.bf16.gmra.mxu0 %v523
        %v1495 = vpop.f32.mrf.mxu0
        %v1496 = vadd.f32 %v1453, %v1495
        %v1497 = vpop.f32.mrf.mxu0
        %v1498 = vadd.f32 %v1455, %v1497
        %1499 = vmatmul.bf16.gmra.mxu0 %v525
        %v1500 = vpop.f32.mrf.mxu0
        %v1501 = vadd.f32 %v1458, %v1500
        %v1502 = vpop.f32.mrf.mxu0
        %1503 = vdwg.mxu0
        %1504 = vmatpush.bf16.msra.mxu0 %v1074
        %1505 = vmatpush.bf16.msra.mxu0 %v1067
        %1506 = vmatpush.bf16.msra.mxu0 %v1060
        %1507 = vmatpush.bf16.msra.mxu0 %v1053
        %1508 = vmatpush.bf16.msra.mxu0 %v1046
        %1509 = vmatpush.bf16.msra.mxu0 %v1039
        %1510 = vmatpush.bf16.msra.mxu0 %v1032
        %1511 = vmatpush.bf16.msra.mxu0 %v1025
        %1512 = vmatmul.bf16.gmra.mxu0 %v512
        %v1513 = vpop.f32.mrf.mxu0
        %v1514 = vadd.f32 %v659, %v1513
        %v1515 = vpop.f32.mrf.mxu0
        %v1516 = vadd.f32 %v659, %v1515
        %1517 = vmatmul.bf16.gmra.mxu0 %v514
        %v1518 = vpop.f32.mrf.mxu0
        %v1519 = vadd.f32 %v659, %v1518
        %v1520 = vpop.f32.mrf.mxu0
        %v1521 = vadd.f32 %v659, %v1520
        %1522 = vmatmul.bf16.gmra.mxu0 %v516
        %v1523 = vpop.f32.mrf.mxu0
        %v1524 = vadd.f32 %v659, %v1523
        %v1525 = vpop.f32.mrf.mxu0
        %v1526 = vadd.f32 %v659, %v1525
        %1527 = vmatmul.bf16.gmra.mxu0 %v518
        %v1528 = vpop.f32.mrf.mxu0
        %v1529 = vadd.f32 %v659, %v1528
        %v1530 = vpop.f32.mrf.mxu0
        %v1531 = vadd.f32 %v659, %v1530
        %1532 = vmatmul.bf16.gmra.mxu0 %v520
        %v1533 = vpop.f32.mrf.mxu0
        %v1534 = vadd.f32 %v659, %v1533
        %v1535 = vpop.f32.mrf.mxu0
        %v1536 = vadd.f32 %v659, %v1535
        %1537 = vmatmul.bf16.gmra.mxu0 %v522
        %v1538 = vpop.f32.mrf.mxu0
        %v1539 = vadd.f32 %v659, %v1538
        %v1540 = vpop.f32.mrf.mxu0
        %v1541 = vadd.f32 %v659, %v1540
        %1542 = vmatmul.bf16.gmra.mxu0 %v524
        %v1543 = vpop.f32.mrf.mxu0
        %v1544 = vadd.f32 %v659, %v1543
        %v1545 = vpop.f32.mrf.mxu0
        %1546 = vdwg.mxu0
        %1547 = vmatpush.bf16.msra.mxu0 %v1130
        %1548 = vmatpush.bf16.msra.mxu0 %v1123
        %1549 = vmatpush.bf16.msra.mxu0 %v1116
        %1550 = vmatpush.bf16.msra.mxu0 %v1109
        %1551 = vmatpush.bf16.msra.mxu0 %v1102
        %1552 = vmatpush.bf16.msra.mxu0 %v1095
        %1553 = vmatpush.bf16.msra.mxu0 %v1088
        %1554 = vmatpush.bf16.msra.mxu0 %v1081
        %1555 = vmatmul.bf16.gmra.mxu0 %v513
        %v1556 = vpop.f32.mrf.mxu0
        %v1557 = vadd.f32 %v1514, %v1556
        %v1558 = vpop.f32.mrf.mxu0
        %v1559 = vadd.f32 %v1516, %v1558
        %1560 = vmatmul.bf16.gmra.mxu0 %v515
        %v1561 = vpop.f32.mrf.mxu0
        %v1562 = vadd.f32 %v1519, %v1561
        %v1563 = vpop.f32.mrf.mxu0
        %v1564 = vadd.f32 %v1521, %v1563
        %1565 = vmatmul.bf16.gmra.mxu0 %v517
        %v1566 = vpop.f32.mrf.mxu0
        %v1567 = vadd.f32 %v1524, %v1566
        %v1568 = vpop.f32.mrf.mxu0
        %v1569 = vadd.f32 %v1526, %v1568
        %1570 = vmatmul.bf16.gmra.mxu0 %v519
        %v1571 = vpop.f32.mrf.mxu0
        %v1572 = vadd.f32 %v1529, %v1571
        %v1573 = vpop.f32.mrf.mxu0
        %v1574 = vadd.f32 %v1531, %v1573
        %1575 = vmatmul.bf16.gmra.mxu0 %v521
        %v1576 = vpop.f32.mrf.mxu0
        %v1577 = vadd.f32 %v1534, %v1576
        %v1578 = vpop.f32.mrf.mxu0
        %v1579 = vadd.f32 %v1536, %v1578
        %1580 = vmatmul.bf16.gmra.mxu0 %v523
        %v1581 = vpop.f32.mrf.mxu0
        %v1582 = vadd.f32 %v1539, %v1581
        %v1583 = vpop.f32.mrf.mxu0
        %v1584 = vadd.f32 %v1541, %v1583
        %1585 = vmatmul.bf16.gmra.mxu0 %v525
        %v1586 = vpop.f32.mrf.mxu0
        %v1587 = vadd.f32 %v1544, %v1586
        %v1588 = vpop.f32.mrf.mxu0
        %1589 = vdwg.mxu0
        %1590 = vmatpush.bf16.msra.mxu0 %v1075
        %1591 = vmatpush.bf16.msra.mxu0 %v1068
        %1592 = vmatpush.bf16.msra.mxu0 %v1061
        %1593 = vmatpush.bf16.msra.mxu0 %v1054
        %1594 = vmatpush.bf16.msra.mxu0 %v1047
        %1595 = vmatpush.bf16.msra.mxu0 %v1040
        %1596 = vmatpush.bf16.msra.mxu0 %v1033
        %1597 = vmatpush.bf16.msra.mxu0 %v1026
        %1598 = vmatmul.bf16.gmra.mxu0 %v512
        %v1599 = vpop.f32.mrf.mxu0
        %v1600 = vadd.f32 %v660, %v1599
        %v1601 = vpop.f32.mrf.mxu0
        %v1602 = vadd.f32 %v660, %v1601
        %1603 = vmatmul.bf16.gmra.mxu0 %v514
        %v1604 = vpop.f32.mrf.mxu0
        %v1605 = vadd.f32 %v660, %v1604
        %v1606 = vpop.f32.mrf.mxu0
        %v1607 = vadd.f32 %v660, %v1606
        %1608 = vmatmul.bf16.gmra.mxu0 %v516
        %v1609 = vpop.f32.mrf.mxu0
        %v1610 = vadd.f32 %v660, %v1609
        %v1611 = vpop.f32.mrf.mxu0
        %v1612 = vadd.f32 %v660, %v1611
        %1613 = vmatmul.bf16.gmra.mxu0 %v518
        %v1614 = vpop.f32.mrf.mxu0
        %v1615 = vadd.f32 %v660, %v1614
        %v1616 = vpop.f32.mrf.mxu0
        %v1617 = vadd.f32 %v660, %v1616
        %1618 = vmatmul.bf16.gmra.mxu0 %v520
        %v1619 = vpop.f32.mrf.mxu0
        %v1620 = vadd.f32 %v660, %v1619
        %v1621 = vpop.f32.mrf.mxu0
        %v1622 = vadd.f32 %v660, %v1621
        %1623 = vmatmul.bf16.gmra.mxu0 %v522
        %v1624 = vpop.f32.mrf.mxu0
        %v1625 = vadd.f32 %v660, %v1624
        %v1626 = vpop.f32.mrf.mxu0
        %v1627 = vadd.f32 %v660, %v1626
        %1628 = vmatmul.bf16.gmra.mxu0 %v524
        %v1629 = vpop.f32.mrf.mxu0
        %v1630 = vadd.f32 %v660, %v1629
        %v1631 = vpop.f32.mrf.mxu0
        %1632 = vdwg.mxu0
        %1633 = vmatpush.bf16.msra.mxu0 %v1131
        %1634 = vmatpush.bf16.msra.mxu0 %v1124
        %1635 = vmatpush.bf16.msra.mxu0 %v1117
        %1636 = vmatpush.bf16.msra.mxu0 %v1110
        %1637 = vmatpush.bf16.msra.mxu0 %v1103
        %1638 = vmatpush.bf16.msra.mxu0 %v1096
        %1639 = vmatpush.bf16.msra.mxu0 %v1089
        %1640 = vmatpush.bf16.msra.mxu0 %v1082
        %1641 = vmatmul.bf16.gmra.mxu0 %v513
        %v1642 = vpop.f32.mrf.mxu0
        %v1643 = vadd.f32 %v1600, %v1642
        %v1644 = vpop.f32.mrf.mxu0
        %v1645 = vadd.f32 %v1602, %v1644
        %1646 = vmatmul.bf16.gmra.mxu0 %v515
        %v1647 = vpop.f32.mrf.mxu0
        %v1648 = vadd.f32 %v1605, %v1647
        %v1649 = vpop.f32.mrf.mxu0
        %v1650 = vadd.f32 %v1607, %v1649
        %1651 = vmatmul.bf16.gmra.mxu0 %v517
        %v1652 = vpop.f32.mrf.mxu0
        %v1653 = vadd.f32 %v1610, %v1652
        %v1654 = vpop.f32.mrf.mxu0
        %v1655 = vadd.f32 %v1612, %v1654
        %1656 = vmatmul.bf16.gmra.mxu0 %v519
        %v1657 = vpop.f32.mrf.mxu0
        %v1658 = vadd.f32 %v1615, %v1657
        %v1659 = vpop.f32.mrf.mxu0
        %v1660 = vadd.f32 %v1617, %v1659
        %1661 = vmatmul.bf16.gmra.mxu0 %v521
        %v1662 = vpop.f32.mrf.mxu0
        %v1663 = vadd.f32 %v1620, %v1662
        %v1664 = vpop.f32.mrf.mxu0
        %v1665 = vadd.f32 %v1622, %v1664
        %1666 = vmatmul.bf16.gmra.mxu0 %v523
        %v1667 = vpop.f32.mrf.mxu0
        %v1668 = vadd.f32 %v1625, %v1667
        %v1669 = vpop.f32.mrf.mxu0
        %v1670 = vadd.f32 %v1627, %v1669
        %1671 = vmatmul.bf16.gmra.mxu0 %v525
        %v1672 = vpop.f32.mrf.mxu0
        %v1673 = vadd.f32 %v1630, %v1672
        %v1674 = vpop.f32.mrf.mxu0
        %1675 = vdwg.mxu0
        %1676 = vmatpush.bf16.msra.mxu0 %v1076
        %1677 = vmatpush.bf16.msra.mxu0 %v1069
        %1678 = vmatpush.bf16.msra.mxu0 %v1062
        %1679 = vmatpush.bf16.msra.mxu0 %v1055
        %1680 = vmatpush.bf16.msra.mxu0 %v1048
        %1681 = vmatpush.bf16.msra.mxu0 %v1041
        %1682 = vmatpush.bf16.msra.mxu0 %v1034
        %1683 = vmatpush.bf16.msra.mxu0 %v1027
        %1684 = vmatmul.bf16.gmra.mxu0 %v512
        %v1685 = vpop.f32.mrf.mxu0
        %v1686 = vadd.f32 %v661, %v1685
        %v1687 = vpop.f32.mrf.mxu0
        %v1688 = vadd.f32 %v661, %v1687
        %1689 = vmatmul.bf16.gmra.mxu0 %v514
        %v1690 = vpop.f32.mrf.mxu0
        %v1691 = vadd.f32 %v661, %v1690
        %v1692 = vpop.f32.mrf.mxu0
        %v1693 = vadd.f32 %v661, %v1692
        %1694 = vmatmul.bf16.gmra.mxu0 %v516
        %v1695 = vpop.f32.mrf.mxu0
        %v1696 = vadd.f32 %v661, %v1695
        %v1697 = vpop.f32.mrf.mxu0
        %v1698 = vadd.f32 %v661, %v1697
        %1699 = vmatmul.bf16.gmra.mxu0 %v518
        %v1700 = vpop.f32.mrf.mxu0
        %v1701 = vadd.f32 %v661, %v1700
        %v1702 = vpop.f32.mrf.mxu0
        %v1703 = vadd.f32 %v661, %v1702
        %1704 = vmatmul.bf16.gmra.mxu0 %v520
        %v1705 = vpop.f32.mrf.mxu0
        %v1706 = vadd.f32 %v661, %v1705
        %v1707 = vpop.f32.mrf.mxu0
        %v1708 = vadd.f32 %v661, %v1707
        %1709 = vmatmul.bf16.gmra.mxu0 %v522
        %v1710 = vpop.f32.mrf.mxu0
        %v1711 = vadd.f32 %v661, %v1710
        %v1712 = vpop.f32.mrf.mxu0
        %v1713 = vadd.f32 %v661, %v1712
        %1714 = vmatmul.bf16.gmra.mxu0 %v524
        %v1715 = vpop.f32.mrf.mxu0
        %v1716 = vadd.f32 %v661, %v1715
        %v1717 = vpop.f32.mrf.mxu0
        %1718 = vdwg.mxu0
        %1719 = vmatpush.bf16.msra.mxu0 %v1132
        %1720 = vmatpush.bf16.msra.mxu0 %v1125
        %1721 = vmatpush.bf16.msra.mxu0 %v1118
        %1722 = vmatpush.bf16.msra.mxu0 %v1111
        %1723 = vmatpush.bf16.msra.mxu0 %v1104
        %1724 = vmatpush.bf16.msra.mxu0 %v1097
        %1725 = vmatpush.bf16.msra.mxu0 %v1090
        %1726 = vmatpush.bf16.msra.mxu0 %v1083
        %1727 = vmatmul.bf16.gmra.mxu0 %v513
        %v1728 = vpop.f32.mrf.mxu0
        %v1729 = vadd.f32 %v1686, %v1728
        %v1730 = vpop.f32.mrf.mxu0
        %v1731 = vadd.f32 %v1688, %v1730
        %1732 = vmatmul.bf16.gmra.mxu0 %v515
        %v1733 = vpop.f32.mrf.mxu0
        %v1734 = vadd.f32 %v1691, %v1733
        %v1735 = vpop.f32.mrf.mxu0
        %v1736 = vadd.f32 %v1693, %v1735
        %1737 = vmatmul.bf16.gmra.mxu0 %v517
        %v1738 = vpop.f32.mrf.mxu0
        %v1739 = vadd.f32 %v1696, %v1738
        %v1740 = vpop.f32.mrf.mxu0
        %v1741 = vadd.f32 %v1698, %v1740
        %1742 = vmatmul.bf16.gmra.mxu0 %v519
        %v1743 = vpop.f32.mrf.mxu0
        %v1744 = vadd.f32 %v1701, %v1743
        %v1745 = vpop.f32.mrf.mxu0
        %v1746 = vadd.f32 %v1703, %v1745
        %1747 = vmatmul.bf16.gmra.mxu0 %v521
        %v1748 = vpop.f32.mrf.mxu0
        %v1749 = vadd.f32 %v1706, %v1748
        %v1750 = vpop.f32.mrf.mxu0
        %v1751 = vadd.f32 %v1708, %v1750
        %1752 = vmatmul.bf16.gmra.mxu0 %v523
        %v1753 = vpop.f32.mrf.mxu0
        %v1754 = vadd.f32 %v1711, %v1753
        %v1755 = vpop.f32.mrf.mxu0
        %v1756 = vadd.f32 %v1713, %v1755
        %1757 = vmatmul.bf16.gmra.mxu0 %v525
        %v1758 = vpop.f32.mrf.mxu0
        %v1759 = vadd.f32 %v1716, %v1758
        %v1760 = vpop.f32.mrf.mxu0
        %1761 = vdwg.mxu0
        %1762 = vmatpush.bf16.msra.mxu0 %v1077
        %1763 = vmatpush.bf16.msra.mxu0 %v1070
        %1764 = vmatpush.bf16.msra.mxu0 %v1063
        %1765 = vmatpush.bf16.msra.mxu0 %v1056
        %1766 = vmatpush.bf16.msra.mxu0 %v1049
        %1767 = vmatpush.bf16.msra.mxu0 %v1042
        %1768 = vmatpush.bf16.msra.mxu0 %v1035
        %1769 = vmatpush.bf16.msra.mxu0 %v1028
        %1770 = vmatmul.bf16.gmra.mxu0 %v512
        %v1771 = vpop.f32.mrf.mxu0
        %v1772 = vadd.f32 %v662, %v1771
        %v1773 = vpop.f32.mrf.mxu0
        %v1774 = vadd.f32 %v662, %v1773
        %1775 = vmatmul.bf16.gmra.mxu0 %v514
        %v1776 = vpop.f32.mrf.mxu0
        %v1777 = vadd.f32 %v662, %v1776
        %v1778 = vpop.f32.mrf.mxu0
        %v1779 = vadd.f32 %v662, %v1778
        %1780 = vmatmul.bf16.gmra.mxu0 %v516
        %v1781 = vpop.f32.mrf.mxu0
        %v1782 = vadd.f32 %v662, %v1781
        %v1783 = vpop.f32.mrf.mxu0
        %v1784 = vadd.f32 %v662, %v1783
        %1785 = vmatmul.bf16.gmra.mxu0 %v518
        %v1786 = vpop.f32.mrf.mxu0
        %v1787 = vadd.f32 %v662, %v1786
        %v1788 = vpop.f32.mrf.mxu0
        %v1789 = vadd.f32 %v662, %v1788
        %1790 = vmatmul.bf16.gmra.mxu0 %v520
        %v1791 = vpop.f32.mrf.mxu0
        %v1792 = vadd.f32 %v662, %v1791
        %v1793 = vpop.f32.mrf.mxu0
        %v1794 = vadd.f32 %v662, %v1793
        %1795 = vmatmul.bf16.gmra.mxu0 %v522
        %v1796 = vpop.f32.mrf.mxu0
        %v1797 = vadd.f32 %v662, %v1796
        %v1798 = vpop.f32.mrf.mxu0
        %v1799 = vadd.f32 %v662, %v1798
        %1800 = vmatmul.bf16.gmra.mxu0 %v524
        %v1801 = vpop.f32.mrf.mxu0
        %v1802 = vadd.f32 %v662, %v1801
        %v1803 = vpop.f32.mrf.mxu0
        %1804 = vdwg.mxu0
        %1805 = vmatpush.bf16.msra.mxu0 %v1133
        %1806 = vmatpush.bf16.msra.mxu0 %v1126
        %1807 = vmatpush.bf16.msra.mxu0 %v1119
        %1808 = vmatpush.bf16.msra.mxu0 %v1112
        %1809 = vmatpush.bf16.msra.mxu0 %v1105
        %1810 = vmatpush.bf16.msra.mxu0 %v1098
        %1811 = vmatpush.bf16.msra.mxu0 %v1091
        %1812 = vmatpush.bf16.msra.mxu0 %v1084
        %1813 = vmatmul.bf16.gmra.mxu0 %v513
        %v1814 = vpop.f32.mrf.mxu0
        %v1815 = vadd.f32 %v1772, %v1814
        %v1816 = vpop.f32.mrf.mxu0
        %v1817 = vadd.f32 %v1774, %v1816
        %1818 = vmatmul.bf16.gmra.mxu0 %v515
        %v1819 = vpop.f32.mrf.mxu0
        %v1820 = vadd.f32 %v1777, %v1819
        %v1821 = vpop.f32.mrf.mxu0
        %v1822 = vadd.f32 %v1779, %v1821
        %1823 = vmatmul.bf16.gmra.mxu0 %v517
        %v1824 = vpop.f32.mrf.mxu0
        %v1825 = vadd.f32 %v1782, %v1824
        %v1826 = vpop.f32.mrf.mxu0
        %v1827 = vadd.f32 %v1784, %v1826
        %1828 = vmatmul.bf16.gmra.mxu0 %v519
        %v1829 = vpop.f32.mrf.mxu0
        %v1830 = vadd.f32 %v1787, %v1829
        %v1831 = vpop.f32.mrf.mxu0
        %v1832 = vadd.f32 %v1789, %v1831
        %1833 = vmatmul.bf16.gmra.mxu0 %v521
        %v1834 = vpop.f32.mrf.mxu0
        %v1835 = vadd.f32 %v1792, %v1834
        %v1836 = vpop.f32.mrf.mxu0
        %v1837 = vadd.f32 %v1794, %v1836
        %1838 = vmatmul.bf16.gmra.mxu0 %v523
        %v1839 = vpop.f32.mrf.mxu0
        %v1840 = vadd.f32 %v1797, %v1839
        %v1841 = vpop.f32.mrf.mxu0
        %v1842 = vadd.f32 %v1799, %v1841
        %1843 = vmatmul.bf16.gmra.mxu0 %v525
        %v1844 = vpop.f32.mrf.mxu0
        %v1845 = vadd.f32 %v1802, %v1844
        %v1846 = vpop.f32.mrf.mxu0
        %1847 = vdwg.mxu0
        %v1848 = vtanh.pop %v1299
        %v1849 = vtanh.pop %v1385
        %v1850 = vtanh.pop %v1471
        %v1851 = vtanh.pop %v1557
        %v1852 = vtanh.pop %v1643
        %v1853 = vtanh.pop %v1729
        %v1854 = vtanh.pop %v1815
        %v1855 = vtanh.pop %v1301
        %v1856 = vtanh.pop %v1387
        %v1857 = vtanh.pop %v1473
        %v1858 = vtanh.pop %v1559
        %v1859 = vtanh.pop %v1645
        %v1860 = vtanh.pop %v1731
        %v1861 = vtanh.pop %v1817
        %v1862 = vtanh.pop %v1304
        %v1863 = vtanh.pop %v1390
        %v1864 = vtanh.pop %v1476
        %v1865 = vtanh.pop %v1562
        %v1866 = vtanh.pop %v1648
        %v1867 = vtanh.pop %v1734
        %v1868 = vtanh.pop %v1820
        %v1869 = vtanh.pop %v1306
        %v1870 = vtanh.pop %v1392
        %v1871 = vtanh.pop %v1478
        %v1872 = vtanh.pop %v1564
        %v1873 = vtanh.pop %v1650
        %v1874 = vtanh.pop %v1736
        %v1875 = vtanh.pop %v1822
        %v1876 = vtanh.pop %v1309
        %v1877 = vtanh.pop %v1395
        %v1878 = vtanh.pop %v1481
        %v1879 = vtanh.pop %v1567
        %v1880 = vtanh.pop %v1653
        %v1881 = vtanh.pop %v1739
        %v1882 = vtanh.pop %v1825
        %v1883 = vtanh.pop %v1311
        %v1884 = vtanh.pop %v1397
        %v1885 = vtanh.pop %v1483
        %v1886 = vtanh.pop %v1569
        %v1887 = vtanh.pop %v1655
        %v1888 = vtanh.pop %v1741
        %v1889 = vtanh.pop %v1827
        %v1890 = vtanh.pop %v1314
        %v1891 = vtanh.pop %v1400
        %v1892 = vtanh.pop %v1486
        %v1893 = vtanh.pop %v1572
        %v1894 = vtanh.pop %v1658
        %v1895 = vtanh.pop %v1744
        %v1896 = vtanh.pop %v1830
        %v1897 = vtanh.pop %v1316
        %v1898 = vtanh.pop %v1402
        %v1899 = vtanh.pop %v1488
        %v1900 = vtanh.pop %v1574
        %v1901 = vtanh.pop %v1660
        %v1902 = vtanh.pop %v1746
        %v1903 = vtanh.pop %v1832
        %v1904 = vtanh.pop %v1319
        %v1905 = vtanh.pop %v1405
        %v1906 = vtanh.pop %v1491
        %v1907 = vtanh.pop %v1577
        %v1908 = vtanh.pop %v1663
        %v1909 = vtanh.pop %v1749
        %v1910 = vtanh.pop %v1835
        %v1911 = vtanh.pop %v1321
        %v1912 = vtanh.pop %v1407
        %v1913 = vtanh.pop %v1493
        %v1914 = vtanh.pop %v1579
        %v1915 = vtanh.pop %v1665
        %v1916 = vtanh.pop %v1751
        %v1917 = vtanh.pop %v1837
        %v1918 = vtanh.pop %v1324
        %v1919 = vtanh.pop %v1410
        %v1920 = vtanh.pop %v1496
        %v1921 = vtanh.pop %v1582
        %v1922 = vtanh.pop %v1668
        %v1923 = vtanh.pop %v1754
        %v1924 = vtanh.pop %v1840
        %v1925 = vtanh.pop %v1326
        %v1926 = vtanh.pop %v1412
        %v1927 = vtanh.pop %v1498
        %v1928 = vtanh.pop %v1584
        %v1929 = vtanh.pop %v1670
        %v1930 = vtanh.pop %v1756
        %v1931 = vtanh.pop %v1842
        %v1932 = vtanh.pop %v1329
        %v1933 = vtanh.pop %v1415
        %v1934 = vtanh.pop %v1501
        %v1935 = vtanh.pop %v1587
        %v1936 = vtanh.pop %v1673
        %v1937 = vtanh.pop %v1759
        %v1938 = vtanh.pop %v1845
        %1939 = vst [vmem:[%s230] sm:$0xff] %v1848
        %1940 = vst [vmem:[%s230 + $0x8] sm:$0xff] %v1849
        %1941 = vst [vmem:[%s230 + $0x10] sm:$0xff] %v1850
        %1942 = vst [vmem:[%s230 + $0x18] sm:$0xff] %v1851
        %1943 = vst [vmem:[%s230 + $0x20] sm:$0xff] %v1852
        %1944 = vst [vmem:[%s230 + $0x28] sm:$0xff] %v1853
        %vm1945 = vcmask 130048
        %1946 = vst.msk [vmem:[%s230 + $0x30] sm:$0xff] %vm1945, %v1854
        %1947 = vst [vmem:[%s230 + $0x38] sm:$0xff] %v1855
        %1948 = vst [vmem:[%s230 + $0x40] sm:$0xff] %v1856
        %1949 = vst [vmem:[%s230 + $0x48] sm:$0xff] %v1857
        %1950 = vst [vmem:[%s230 + $0x50] sm:$0xff] %v1858
        %1951 = vst [vmem:[%s230 + $0x58] sm:$0xff] %v1859
        %1952 = vst [vmem:[%s230 + $0x60] sm:$0xff] %v1860
        %1953 = vst.msk [vmem:[%s230 + $0x68] sm:$0xff] %vm1945, %v1861
        %1954 = vst [vmem:[%s230 + $0x70] sm:$0xff] %v1862
        %1955 = vst [vmem:[%s230 + $0x78] sm:$0xff] %v1863
        %1956 = vst [vmem:[%s230 + $0x80] sm:$0xff] %v1864
        %1957 = vst [vmem:[%s230 + $0x88] sm:$0xff] %v1865
        %1958 = vst [vmem:[%s230 + $0x90] sm:$0xff] %v1866
        %1959 = vst [vmem:[%s230 + $0x98] sm:$0xff] %v1867
        %1960 = vst.msk [vmem:[%s230 + $0xa0] sm:$0xff] %vm1945, %v1868
        %1961 = vst [vmem:[%s230 + $0xa8] sm:$0xff] %v1869
        %1962 = vst [vmem:[%s230 + $0xb0] sm:$0xff] %v1870
        %1963 = vst [vmem:[%s230 + $0xb8] sm:$0xff] %v1871
        %1964 = vst [vmem:[%s230 + $0xc0] sm:$0xff] %v1872
        %1965 = vst [vmem:[%s230 + $0xc8] sm:$0xff] %v1873
        %1966 = vst [vmem:[%s230 + $0xd0] sm:$0xff] %v1874
        %1967 = vst.msk [vmem:[%s230 + $0xd8] sm:$0xff] %vm1945, %v1875
        %1968 = vst [vmem:[%s230 + $0xe0] sm:$0xff] %v1876
        %1969 = vst [vmem:[%s230 + $0xe8] sm:$0xff] %v1877
        %1970 = vst [vmem:[%s230 + $0xf0] sm:$0xff] %v1878
        %1971 = vst [vmem:[%s230 + $0xf8] sm:$0xff] %v1879
        %1972 = vst [vmem:[%s230 + $0x100] sm:$0xff] %v1880
        %1973 = vst [vmem:[%s230 + $0x108] sm:$0xff] %v1881
        %1974 = vst.msk [vmem:[%s230 + $0x110] sm:$0xff] %vm1945, %v1882
        %1975 = vst [vmem:[%s230 + $0x118] sm:$0xff] %v1883
        %1976 = vst [vmem:[%s230 + $0x120] sm:$0xff] %v1884
        %1977 = vst [vmem:[%s230 + $0x128] sm:$0xff] %v1885
        %1978 = vst [vmem:[%s230 + $0x130] sm:$0xff] %v1886
        %1979 = vst [vmem:[%s230 + $0x138] sm:$0xff] %v1887
        %1980 = vst [vmem:[%s230 + $0x140] sm:$0xff] %v1888
        %1981 = vst.msk [vmem:[%s230 + $0x148] sm:$0xff] %vm1945, %v1889
        %1982 = vst [vmem:[%s230 + $0x150] sm:$0xff] %v1890
        %1983 = vst [vmem:[%s230 + $0x158] sm:$0xff] %v1891
        %1984 = vst [vmem:[%s230 + $0x160] sm:$0xff] %v1892
        %1985 = vst [vmem:[%s230 + $0x168] sm:$0xff] %v1893
        %1986 = vst [vmem:[%s230 + $0x170] sm:$0xff] %v1894
        %1987 = vst [vmem:[%s230 + $0x178] sm:$0xff] %v1895
        %1988 = vst.msk [vmem:[%s230 + $0x180] sm:$0xff] %vm1945, %v1896
        %1989 = vst [vmem:[%s230 + $0x188] sm:$0xff] %v1897
        %1990 = vst [vmem:[%s230 + $0x190] sm:$0xff] %v1898
        %1991 = vst [vmem:[%s230 + $0x198] sm:$0xff] %v1899
        %1992 = vst [vmem:[%s230 + $0x1a0] sm:$0xff] %v1900
        %1993 = vst [vmem:[%s230 + $0x1a8] sm:$0xff] %v1901
        %1994 = vst [vmem:[%s230 + $0x1b0] sm:$0xff] %v1902
        %1995 = vst.msk [vmem:[%s230 + $0x1b8] sm:$0xff] %vm1945, %v1903
        %1996 = vst [vmem:[%s230 + $0x1c0] sm:$0xff] %v1904
        %1997 = vst [vmem:[%s230 + $0x1c8] sm:$0xff] %v1905
        %1998 = vst [vmem:[%s230 + $0x1d0] sm:$0xff] %v1906
        %1999 = vst [vmem:[%s230 + $0x1d8] sm:$0xff] %v1907
        %2000 = vst [vmem:[%s230 + $0x1e0] sm:$0xff] %v1908
        %2001 = vst [vmem:[%s230 + $0x1e8] sm:$0xff] %v1909
        %2002 = vst.msk [vmem:[%s230 + $0x1f0] sm:$0xff] %vm1945, %v1910
        %2003 = vst [vmem:[%s230 + $0x1f8] sm:$0xff] %v1911
        %2004 = vst [vmem:[%s230 + $0x200] sm:$0xff] %v1912
        %2005 = vst [vmem:[%s230 + $0x208] sm:$0xff] %v1913
        %2006 = vst [vmem:[%s230 + $0x210] sm:$0xff] %v1914
        %2007 = vst [vmem:[%s230 + $0x218] sm:$0xff] %v1915
        %2008 = vst [vmem:[%s230 + $0x220] sm:$0xff] %v1916
        %2009 = vst.msk [vmem:[%s230 + $0x228] sm:$0xff] %vm1945, %v1917
        %2010 = vst [vmem:[%s230 + $0x230] sm:$0xff] %v1918
        %2011 = vst [vmem:[%s230 + $0x238] sm:$0xff] %v1919
        %2012 = vst [vmem:[%s230 + $0x240] sm:$0xff] %v1920
        %2013 = vst [vmem:[%s230 + $0x248] sm:$0xff] %v1921
        %2014 = vst [vmem:[%s230 + $0x250] sm:$0xff] %v1922
        %2015 = vst [vmem:[%s230 + $0x258] sm:$0xff] %v1923
        %2016 = vst.msk [vmem:[%s230 + $0x260] sm:$0xff] %vm1945, %v1924
        %2017 = vst [vmem:[%s230 + $0x268] sm:$0xff] %v1925
        %2018 = vst [vmem:[%s230 + $0x270] sm:$0xff] %v1926
        %2019 = vst [vmem:[%s230 + $0x278] sm:$0xff] %v1927
        %2020 = vst [vmem:[%s230 + $0x280] sm:$0xff] %v1928
        %2021 = vst [vmem:[%s230 + $0x288] sm:$0xff] %v1929
        %2022 = vst [vmem:[%s230 + $0x290] sm:$0xff] %v1930
        %2023 = vst.msk [vmem:[%s230 + $0x298] sm:$0xff] %vm1945, %v1931
        %2024 = vst [vmem:[%s230 + $0x2a0] sm:$0xff] %v1932
        %2025 = vst [vmem:[%s230 + $0x2a8] sm:$0xff] %v1933
        %2026 = vst [vmem:[%s230 + $0x2b0] sm:$0xff] %v1934
        %2027 = vst [vmem:[%s230 + $0x2b8] sm:$0xff] %v1935
        %2028 = vst [vmem:[%s230 + $0x2c0] sm:$0xff] %v1936
        %2029 = vst [vmem:[%s230 + $0x2c8] sm:$0xff] %v1937
        %2030 = vst.msk [vmem:[%s230 + $0x2d0] sm:$0xff] %vm1945, %v1938
        %s2031 = sand.u32 %s137, 1
        %s2032 = scalar_lea.sflag [#allocation3], %s2031
        %s2033 = sand.u32 %s137, 1
        %s2034 = smul.addr %s2033, 728
        %s2035 = scalar_lea.vmem [#allocation2], %s2034
        // Predicated region
        $region41: #{tpu_custom_call.1} parent=39 // pred_check
          %p2036 = pneg %p147
        $region42: #{tpu_custom_call.1} parent=39 // pred_check_branch
          %2038 = sbr.rel (%p2036) target = $region44
        $region43: #{tpu_custom_call.1} parent=39 // pred_region
          %s2039 = smul.u32 13, %s19
          %s2040 = ssub.s32 25, %s2039
          %p2041 = scmp.lt.s32.totalorder %s2040, 13
          %s2042 = scalar_select %p2041, %s2040, 13
          %s2043 = smul.u32 8, %s2042
          %s2044 = smul.u32 %s2043, 7
          %s2045 = ssub.s32 728, %s2044
          %s2046 = sshll.u32 %s2045, 4
          %2047 = vsyncadd %s2032, %s2046
          %p2048 = scmp.ne.s32.totalorder 0, %s2044
          %s2049 = smul.addr %s2039, 7
          %s2050 = smul.addr %s2049, 8
          %s2051 = scalar_lea.hbm %s5, %s2050
          %s2052 = smul.u32 56, %s2042
          %s2053 = sshll.u32 %s2035, 4
          %s2054 = int_to_ptr.vmem [resolvable:$true] %s2053
          %s2055 = sshll.u32 %s2051, 4
          %s2056 = int_to_ptr.hbm [resolvable:$true] %s2055
          %s2057 = sshll.u32 %s2052, 4
          %2061 = dma.vmem_to_hbm [thread:$0]  (%p2048), %s2054, %s2057, %s2056, %s2032, 896, 896, 56
        $region44: #{tpu_custom_call.1} parent=39 // pred_fallthru
          _
      $region40: #{tpu_custom_call.1} parent=5 // pred_fallthru
        _
      %p2062 = scmp.le.s32.totalorder 2, %s14
      // Predicated region
      $region45: #{tpu_custom_call.1} parent=5 // pred_check
        %p2063 = pneg %p2062
      $region46: #{tpu_custom_call.1} parent=5 // pred_check_branch
        %2065 = sbr.rel (%p2063) target = $region48
      $region47: #{tpu_custom_call.1} parent=5 // pred_region
        %s2066 = ssub.s32 %s14, 2
        // Predicated region
        $region49: #{tpu_custom_call.1} parent=47 // pred_check
          %p2067 = pneg %p153
        $region50: #{tpu_custom_call.1} parent=47 // pred_check_branch
          %2069 = sbr.rel (%p2067) target = $region52
        $region51: #{tpu_custom_call.1} parent=47 // pred_region
          %s2070 = sand.u32 %s138, 1
          %s2071 = scalar_lea.sflag [#allocation3], %s2070
          %s2072 = sand.u32 %s138, 1
          %s2073 = smul.addr %s2072, 728
          %s2074 = scalar_lea.vmem [#allocation2], %s2073
          %2076 = dma.done %s2071, 11648
        $region52: #{tpu_custom_call.1} parent=47 // pred_fallthru
          _
      $region48: #{tpu_custom_call.1} parent=5 // pred_fallthru
        _
    $region6: #{tpu_custom_call.1} parent=1 // loop_footer
      %s18 = sadd.s32 1, %s14
    $region7: #{tpu_custom_call.1} parent=1 // loop_footer_branch
      %13 = sbr.rel target = $region3
    $region8: #{tpu_custom_call.1} parent=1 // loop_exit
      _
    %2077 = vsyncpa [#allocation3], 1
    %s2078 = scalar_lea.sflag [#allocation3], 1
    %2079 = vsyncpa %s2078, 1

</llo_original>
